<compile_context>
chip_gen: v5e
topology: v5e:2x2
jax: 0.10.0
libtpu: 0.0.40
codegen_flags: <defaults>
</compile_context>

<pallas_src>
import math

import numpy as np
import jax
import jax.numpy as jnp
from jax.experimental import pallas as pl
from jax.experimental.pallas import tpu as pltpu

# ---------------- config (small synthetic shapes) ----------------
B = 2            # batch
C_IN = 3         # image channels
H = W = 16       # image spatial size (already divisible -> ImageList adds no pad)
PATCH = 4        # backbone "stride"
HF, WF = H // PATCH, W // PATCH
P = HF * WF      # number of backbone tokens = 16
HW = H * W       # 256 (lane-dense)
D = 32           # hidden dim
Q = 8            # num_queries
NUM_CLASSES = 5
C1 = NUM_CLASSES + 1
KRAW = C_IN * PATCH * PATCH   # 48
KPAD = 128                    # lane-dense contraction dim for the patch embed
STATS_W = 128                 # lane-dense stats slab: col0=score col1=label col2=keep
OBJECT_MASK_THRESHOLD = 0.0
OVERLAP_THRESHOLD = 0.8
THING_IDS = {0, 1, 2}   # synthetic metadata.thing_dataset_id_to_contiguous_id.values()

PIXEL_MEAN = np.array([123.675, 116.28, 103.53], np.float32)
PIXEL_STD = np.array([58.395, 57.12, 57.375], np.float32)


# ---------------- bilinear upsample as a Kronecker matrix ----------------
def _bilinear_matrix(n_in, n_out):
    # PyTorch F.interpolate(mode='bilinear', align_corners=False) as a matrix.
    scale = n_in / n_out
    U = np.zeros((n_out, n_in), np.float32)
    for i in range(n_out):
        src = (i + 0.5) * scale - 0.5
        src = max(src, 0.0)
        x0 = int(np.floor(src))
        x1 = min(x0 + 1, n_in - 1)
        w1 = src - x0
        U[i, x0] += 1.0 - w1
        U[i, x1] += w1
    return U


_U = _bilinear_matrix(HF, H)                       # (H, HF); H == W so reused
_UKRON = jnp.asarray(np.kron(_U, _U).T)            # (P, HW): one matmul == 2-D bilinear


# ---------------- fused Pallas kernel (one grid step == one image) ----------------
def _teacher_kernel(xp_ref, wpatch_ref, bpatch_ref, qemb_ref,
                    wq_ref, wk_ref, wv_ref, wpix_ref, bpix_ref,
                    wm_ref, wc_ref, bc_ref, ukron_ref,
                    stats_ref, masks_ref, sig_ref, prob_ref, ids_ref):
    inv_sqrt_d = 1.0 / math.sqrt(D)

    # backbone: patch-embed linear (+ ReLU); pixel normalization already folded
    # into wpatch/bpatch on host, so xp holds raw pixels.
    xp = xp_ref[0]                                                       # (P, KPAD)
    feat = jnp.maximum(
        jnp.dot(xp, wpatch_ref[...], preferred_element_type=jnp.float32)
        + bpatch_ref[...], 0.0)                                          # (P, D)

    # pixel decoder (1x1 conv as matmul) + ReLU -> mask features; K/V projections.
    mf = jnp.maximum(
        jnp.dot(feat, wpix_ref[...], preferred_element_type=jnp.float32)
        + bpix_ref[...], 0.0)                                            # (P, D)
    k = jnp.dot(feat, wk_ref[...], preferred_element_type=jnp.float32)   # (P, D)
    v = jnp.dot(feat, wv_ref[...], preferred_element_type=jnp.float32)   # (P, D)

    qemb = qemb_ref[...]                                                 # (Q, D)
    q = jnp.dot(qemb, wq_ref[...], preferred_element_type=jnp.float32)   # (Q, D)

    # one cross-attention layer (queries attend to backbone tokens)
    attn = jnp.dot(q, k.T, preferred_element_type=jnp.float32) * inv_sqrt_d
    attn = attn - jnp.max(attn, axis=-1, keepdims=True)
    e = jnp.exp(attn)
    attn = e * pl.reciprocal(jnp.sum(e, axis=-1, keepdims=True), approx=True)
    qo = qemb + jnp.dot(attn, v, preferred_element_type=jnp.float32)     # (Q, D)

    # class head -> softmax / max / argmax / keep
    cls = (jnp.dot(qo, wc_ref[...], preferred_element_type=jnp.float32)
           + bc_ref[...])                                                # (Q, C1)
    cm = jnp.max(cls, axis=-1, keepdims=True)
    ce = jnp.exp(cls - cm)
    soft = ce * pl.reciprocal(jnp.sum(ce, axis=-1, keepdims=True), approx=True)
    smax = jnp.max(soft, axis=-1, keepdims=True)                         # (Q, 1)
    ciota = jax.lax.broadcasted_iota(jnp.int32, soft.shape, 1)
    labels = jnp.min(jnp.where(soft == smax, ciota, soft.shape[1]),
                     axis=-1, keepdims=True)                             # (Q, 1)
    keep = jnp.logical_and(labels != NUM_CLASSES,
                           smax > OBJECT_MASK_THRESHOLD)                 # (Q, 1)

    # mask head + bilinear upsample as a single Kronecker matmul
    membed = jnp.dot(qo, wm_ref[...], preferred_element_type=jnp.float32)     # (Q, D)
    mlow = jnp.dot(membed, mf.T, preferred_element_type=jnp.float32)          # (Q, P)
    mfull = jnp.dot(mlow, ukron_ref[...], preferred_element_type=jnp.float32)  # (Q, HW)

    # dense panoptic math: sigmoid, prob masks, per-pixel argmax over kept queries
    sig = pl.reciprocal(1.0 + jnp.exp(-mfull), approx=True)
    prob = smax * sig
    masked = jnp.where(keep, prob, -jnp.inf)
    maxv = jnp.max(masked, axis=0, keepdims=True)                        # (1, HW)
    qiota = jax.lax.broadcasted_iota(jnp.int32, masked.shape, 0)
    ids = jnp.min(jnp.where(masked == maxv, qiota, masked.shape[0]),
                  axis=0, keepdims=True)                                 # (1, HW)

    # lane-dense per-query stats slab: [score, label, keep, 0, ...]
    lane = jax.lax.broadcasted_iota(jnp.int32, (Q, STATS_W), 1)
    stats = jnp.where(lane == 0, smax, 0.0)
    stats = jnp.where(lane == 1, labels.astype(jnp.float32), stats)
    stats = jnp.where(lane == 2, jnp.where(keep, 1.0, 0.0), stats)

    stats_ref[0] = stats
    masks_ref[0] = mfull
    sig_ref[0] = sig
    prob_ref[0] = prob
    ids_ref[0] = ids


# ---------------- device wrapper (single pallas_call, single jit) ----------------
@jax.jit
def teacher_device(images, params):
    # Patchify NCHW -> (B, P, KRAW), zero-pad the contraction dim to 128 lanes.
    # (layout plumbing done by XLA outside the kernel)
    xb = images.reshape(B, C_IN, HF, PATCH, WF, PATCH)
    xb = xb.transpose(0, 2, 4, 1, 3, 5).reshape(B, P, KRAW)
    xb = jnp.pad(xb, ((0, 0), (0, 0), (0, KPAD - KRAW)))

    const = lambda shape: pl.BlockSpec(shape, lambda b: (0,) * len(shape))

    grid_spec = pltpu.PrefetchScalarGridSpec(
        num_scalar_prefetch=0,
        grid=(B,),
        in_specs=[
            pl.BlockSpec((1, P, KPAD), lambda b: (b, 0, 0)),  # per-image patches
            const((KPAD, D)),     # w_patch (norm folded in)
            const((1, D)),        # b_patch
            const((Q, D)),        # qemb
            const((D, D)),        # wq
            const((D, D)),        # wk
            const((D, D)),        # wv
            const((D, D)),        # wpix
            const((1, D)),        # bpix
            const((D, D)),        # wm
            const((D, C1)),       # wc
            const((1, C1)),       # bc
            const((P, HW)),       # ukron (bilinear upsample)
        ],
        out_specs=[
            pl.BlockSpec((1, Q, STATS_W), lambda b: (b, 0, 0)),
            pl.BlockSpec((1, Q, HW), lambda b: (b, 0, 0)),
            pl.BlockSpec((1, Q, HW), lambda b: (b, 0, 0)),
            pl.BlockSpec((1, Q, HW), lambda b: (b, 0, 0)),
            pl.BlockSpec((1, 1, HW), lambda b: (b, 0, 0)),
        ],
    )

    return pl.pallas_call(
        _teacher_kernel,
        grid_spec=grid_spec,
        out_shape=[
            jax.ShapeDtypeStruct((B, Q, STATS_W), jnp.float32),   # score/label/keep
            jax.ShapeDtypeStruct((B, Q, HW), jnp.float32),        # mask logits (full res)
            jax.ShapeDtypeStruct((B, Q, HW), jnp.float32),        # sigmoid masks
            jax.ShapeDtypeStruct((B, Q, HW), jnp.float32),        # prob masks
            jax.ShapeDtypeStruct((B, 1, HW), jnp.int32),          # per-pixel argmax ids
        ],
        compiler_params=pltpu.CompilerParams(
            dimension_semantics=("parallel",),       # megacore split over images (v7x)
            vmem_limit_bytes=32 * 1024 * 1024),
    )(xb, params['w_patch'], params['b_patch'], params['qemb'],
      params['wq'], params['wk'], params['wv'], params['wpix'], params['bpix'],
      params['wm'], params['wc'], params['bc'], params['ukron'])


# ---------------- host-side panoptic segment assembly ----------------
def panoptic_inference_host(scores, labels, keep, sig_masks, prob_masks,
                            mask_logits, mask_ids):
    h, w = H, W
    keep_idx = np.nonzero(keep)[0]
    cur_prob_masks = prob_masks[keep_idx]
    panoptic_seg = np.zeros((h, w), np.int32)
    segments_info = []
    instances = {}
    current_segment_id = 0
    if keep_idx.size == 0:
        instances['gt_masks'] = np.zeros((0, h, w))
        instances['gt_classes'] = np.zeros((0,), np.int64)
        instances['segment_confidence_maps'] = np.zeros((0, h, w), np.float32)
        instances['segment_per_pixel_logits'] = np.zeros((0, h, w), np.float32)
        return {'prob_masks': cur_prob_masks, 'panoptic_seg': panoptic_seg,
                'segments_info': segments_info, 'panoptic_instances': instances}

    stuff_memory = {}
    for k in keep_idx:
        pred_class = int(labels[k])
        isthing = pred_class in THING_IDS
        mask_k = (mask_ids == k)                       # == (cur_mask_ids == position of k)
        mask_area = int(mask_k.sum())
        original_area = int((sig_masks[k] >= 0.5).sum())
        mask = mask_k & (sig_masks[k] >= 0.5)
        if mask_area > 0 and original_area > 0 and int(mask.sum()) > 0:
            if mask_area / original_area < OVERLAP_THRESHOLD:
                continue
            if not isthing:
                if pred_class in stuff_memory:
                    # NOTE: the reference spec does NOT `continue` here -- it merges
                    # the stuff segment and then still falls through to append a new
                    # segment; we mirror that behaviour exactly.
                    seg_id, seg_idx = stuff_memory[pred_class]
                    panoptic_seg[mask] = seg_id
                    segments_info[seg_idx]['segment_confidence_map'] = np.maximum(
                        segments_info[seg_idx]['segment_confidence_map'], prob_masks[k])
                    # TODO(synk): fuse_segment_per_pixel_logits is an undefined external in the
                    # reference; approximated here as elementwise max of the per-pixel logits.
                    segments_info[seg_idx]['segment_per_pixel_logits'] = np.maximum(
                        segments_info[seg_idx]['segment_per_pixel_logits'], mask_logits[k])
                else:
                    stuff_memory[pred_class] = (current_segment_id + 1, len(segments_info))
            current_segment_id += 1
            panoptic_seg[mask] = current_segment_id
            segments_info.append({'id': current_segment_id,
                                  'isthing': bool(isthing),
                                  'category_id': pred_class,
                                  'segment_confidence_map': prob_masks[k],
                                  'segment_per_pixel_logits': mask_logits[k]})

    classes, masks_l, conf_maps, pix_logits = [], [], [], []
    for seg in segments_info:
        classes.append(seg['category_id'])
        masks_l.append(panoptic_seg == seg['id'])
        conf_maps.append(seg.pop('segment_confidence_map'))
        pix_logits.append(seg.pop('segment_per_pixel_logits'))
    instances['gt_classes'] = np.asarray(classes, np.int64)
    if len(masks_l) == 0:
        instances['gt_masks'] = np.zeros((0, h, w))
        instances['segment_confidence_maps'] = np.zeros((0, h, w), np.float32)
        instances['segment_per_pixel_logits'] = np.zeros((0, h, w), np.float32)
    else:
        instances['gt_masks'] = np.stack(masks_l)
        instances['segment_confidence_maps'] = np.stack(conf_maps)
        instances['segment_per_pixel_logits'] = np.stack(pix_logits)
    return {'panoptic_seg': panoptic_seg, 'segments_info': segments_info,
            'panoptic_instances': instances, 'prob_masks': cur_prob_masks}


# ---------------- parameters & forward ----------------
def init_params(key):
    ks = jax.random.split(key, 9)

    def w(k, shape, fan_in):
        return jax.random.normal(k, shape, jnp.float32) / math.sqrt(fan_in)

    # Fold (x - pixel_mean) / pixel_std into the patch-embed linear at init time
    # (affine followed by affine), then zero-pad the contraction dim to 128.
    w_patch_raw = np.asarray(w(ks[0], (KRAW, D), KRAW))
    b_patch_raw = np.zeros((1, D), np.float32)
    std_rows = np.repeat(PIXEL_STD, PATCH * PATCH)        # column order is (c, ph, pw)
    mean_rows = np.repeat(PIXEL_MEAN, PATCH * PATCH)
    w_fold = w_patch_raw / std_rows[:, None]
    b_fold = b_patch_raw - (mean_rows / std_rows)[None, :] @ w_patch_raw
    w_fold = np.concatenate([w_fold, np.zeros((KPAD - KRAW, D), np.float32)], axis=0)

    return {
        'w_patch': jnp.asarray(w_fold),                   # (KPAD, D), norm folded in
        'b_patch': jnp.asarray(b_fold),                   # (1, D)
        'qemb':    w(ks[1], (Q, D), D),
        'wq':      w(ks[2], (D, D), D),
        'wk':      w(ks[3], (D, D), D),
        'wv':      w(ks[4], (D, D), D),
        'wpix':    w(ks[5], (D, D), D),
        'bpix':    jnp.zeros((1, D), jnp.float32),
        'wm':      w(ks[6], (D, D), D),
        'wc':      w(ks[7], (D, C1), D),
        'bc':      jnp.zeros((1, C1), jnp.float32),
        'ukron':   _UKRON,                                # (P, HW) bilinear upsample
    }


def maskformer_teacher_forward(batched_inputs, params):
    # images already share the same (divisible) size -> ImageList adds no padding
    images = jnp.stack([bi['teacher_image'] for bi in batched_inputs])   # (B, C, H, W)
    outs = teacher_device(images, params)

    # single batched device->host transfer of all dense results
    stats, masks_flat, sig_flat, prob_flat, ids_flat = jax.device_get(outs)
    scores = stats[:, :, 0]
    labels = np.rint(stats[:, :, 1]).astype(np.int64)
    keep = stats[:, :, 2] > 0.5
    sig = sig_flat.reshape(B, Q, H, W)
    prob = prob_flat.reshape(B, Q, H, W)
    ids = ids_flat.reshape(B, H, W)
    mask_logits = masks_flat.reshape(B, Q, H, W)

    processed_results = []
    for b in range(B):
        res = {}
        res['panoptic_seg'] = panoptic_inference_host(
            scores[b], labels[b], keep[b], sig[b], prob[b], mask_logits[b], ids[b])
        processed_results.append(res)
    return processed_results, outs


if __name__ == "__main__":
    key = jax.random.PRNGKey(0)
    img_key, _ = jax.random.split(key)
    images = jax.random.uniform(img_key, (B, C_IN, H, W), jnp.float32, 0.0, 255.0)
    batched_inputs = [{'teacher_image': images[i]} for i in range(B)]
    params = init_params(jax.random.PRNGKey(42))

    processed_results, outs = maskformer_teacher_forward(batched_inputs, params)
    jax.block_until_ready(outs)
    assert len(processed_results) == B
    assert processed_results[0]['panoptic_seg']['panoptic_seg'].shape == (H, W)
    print("KERNEL_OK")
</pallas_src>

<mosaic_0001>
module attributes {stable_mosaic.version = 11 : i64} {
  func.func @_teacher_kernel(%arg0: i32, %arg1: memref<1x16x128xf32, #tpu.memory_space<vmem>>, %arg2: memref<128x32xf32, #tpu.memory_space<vmem>>, %arg3: memref<1x32xf32, #tpu.memory_space<vmem>>, %arg4: memref<8x32xf32, #tpu.memory_space<vmem>>, %arg5: memref<32x32xf32, #tpu.memory_space<vmem>>, %arg6: memref<32x32xf32, #tpu.memory_space<vmem>>, %arg7: memref<32x32xf32, #tpu.memory_space<vmem>>, %arg8: memref<32x32xf32, #tpu.memory_space<vmem>>, %arg9: memref<1x32xf32, #tpu.memory_space<vmem>>, %arg10: memref<32x32xf32, #tpu.memory_space<vmem>>, %arg11: memref<32x6xf32, #tpu.memory_space<vmem>>, %arg12: memref<1x6xf32, #tpu.memory_space<vmem>>, %arg13: memref<16x256xf32, #tpu.memory_space<vmem>>, %arg14: memref<1x8x128xf32, #tpu.memory_space<vmem>>, %arg15: memref<1x8x256xf32, #tpu.memory_space<vmem>>, %arg16: memref<1x8x256xf32, #tpu.memory_space<vmem>>, %arg17: memref<1x8x256xf32, #tpu.memory_space<vmem>>, %arg18: memref<1x1x256xi32, #tpu.memory_space<vmem>>) attributes {dimension_semantics = [#tpu.dimension_semantics<parallel>], iteration_bounds = array<i64: 2>, scalar_prefetch = 0 : i64, scratch_operands = 0 : i64, tpu.core_type = #tpu.core_type<tc>, window_params = [{transform_indices = @transform_0, window_bounds = array<i64: 1, 16, 128>}, {pipeline_mode = #tpu.pipeline_mode<synchronous>, transform_indices = @transform_1, window_bounds = array<i64: 128, 32>}, {pipeline_mode = #tpu.pipeline_mode<synchronous>, transform_indices = @transform_2, window_bounds = array<i64: 1, 32>}, {pipeline_mode = #tpu.pipeline_mode<synchronous>, transform_indices = @transform_3, window_bounds = array<i64: 8, 32>}, {pipeline_mode = #tpu.pipeline_mode<synchronous>, transform_indices = @transform_4, window_bounds = array<i64: 32, 32>}, {pipeline_mode = #tpu.pipeline_mode<synchronous>, transform_indices = @transform_5, window_bounds = array<i64: 32, 32>}, {pipeline_mode = #tpu.pipeline_mode<synchronous>, transform_indices = @transform_6, window_bounds = array<i64: 32, 32>}, {pipeline_mode = #tpu.pipeline_mode<synchronous>, transform_indices = @transform_7, window_bounds = array<i64: 32, 32>}, {pipeline_mode = #tpu.pipeline_mode<synchronous>, transform_indices = @transform_8, window_bounds = array<i64: 1, 32>}, {pipeline_mode = #tpu.pipeline_mode<synchronous>, transform_indices = @transform_9, window_bounds = array<i64: 32, 32>}, {pipeline_mode = #tpu.pipeline_mode<synchronous>, transform_indices = @transform_10, window_bounds = array<i64: 32, 6>}, {pipeline_mode = #tpu.pipeline_mode<synchronous>, transform_indices = @transform_11, window_bounds = array<i64: 1, 6>}, {pipeline_mode = #tpu.pipeline_mode<synchronous>, transform_indices = @transform_12, window_bounds = array<i64: 16, 256>}, {transform_indices = @transform_13, window_bounds = array<i64: 1, 8, 128>}, {transform_indices = @transform_14, window_bounds = array<i64: 1, 8, 256>}, {transform_indices = @transform_15, window_bounds = array<i64: 1, 8, 256>}, {transform_indices = @transform_16, window_bounds = array<i64: 1, 8, 256>}, {transform_indices = @transform_17, window_bounds = array<i64: 1, 1, 256>}]} {
    %c0 = arith.constant 0 : index
    %c0_0 = arith.constant 0 : index
    %c0_1 = arith.constant 0 : index
    %0 = vector.load %arg1[%c0, %c0_0, %c0_1] : memref<1x16x128xf32, #tpu.memory_space<vmem>>, vector<1x16x128xf32>
    %1 = vector.shape_cast %0 : vector<1x16x128xf32> to vector<16x128xf32>
    %c0_2 = arith.constant 0 : index
    %c0_3 = arith.constant 0 : index
    %2 = vector.load %arg2[%c0_2, %c0_3] : memref<128x32xf32, #tpu.memory_space<vmem>>, vector<128x32xf32>
    %cst = arith.constant dense<0.000000e+00> : vector<16x32xf32>
    %3 = tpu.matmul %1, %2, %cst {dimension_numbers = #tpu.dot_dimension_numbers<[1], [0], [0], [1], [0, 0, 1, 1], [], []>} : vector<16x128xf32>, vector<128x32xf32>, vector<16x32xf32> -> vector<16x32xf32>
    %c0_4 = arith.constant 0 : index
    %c0_5 = arith.constant 0 : index
    %4 = vector.load %arg3[%c0_4, %c0_5] : memref<1x32xf32, #tpu.memory_space<vmem>>, vector<1x32xf32>
    %5 = vector.broadcast %4 : vector<1x32xf32> to vector<16x32xf32>
    %6 = arith.addf %3, %5 : vector<16x32xf32>
    %cst_6 = arith.constant 0.000000e+00 : f32
    %7 = vector.broadcast %cst_6 : f32 to vector<16x32xf32>
    %8 = arith.maximumf %6, %7 : vector<16x32xf32>
    %c0_7 = arith.constant 0 : index
    %c0_8 = arith.constant 0 : index
    %9 = vector.load %arg8[%c0_7, %c0_8] : memref<32x32xf32, #tpu.memory_space<vmem>>, vector<32x32xf32>
    %cst_9 = arith.constant dense<0.000000e+00> : vector<16x32xf32>
    %10 = tpu.matmul %8, %9, %cst_9 {dimension_numbers = #tpu.dot_dimension_numbers<[1], [0], [0], [1], [0, 0, 1, 1], [], []>} : vector<16x32xf32>, vector<32x32xf32>, vector<16x32xf32> -> vector<16x32xf32>
    %c0_10 = arith.constant 0 : index
    %c0_11 = arith.constant 0 : index
    %11 = vector.load %arg9[%c0_10, %c0_11] : memref<1x32xf32, #tpu.memory_space<vmem>>, vector<1x32xf32>
    %12 = vector.broadcast %11 : vector<1x32xf32> to vector<16x32xf32>
    %13 = arith.addf %10, %12 : vector<16x32xf32>
    %cst_12 = arith.constant 0.000000e+00 : f32
    %14 = vector.broadcast %cst_12 : f32 to vector<16x32xf32>
    %15 = arith.maximumf %13, %14 : vector<16x32xf32>
    %c0_13 = arith.constant 0 : index
    %c0_14 = arith.constant 0 : index
    %16 = vector.load %arg6[%c0_13, %c0_14] : memref<32x32xf32, #tpu.memory_space<vmem>>, vector<32x32xf32>
    %cst_15 = arith.constant dense<0.000000e+00> : vector<16x32xf32>
    %17 = tpu.matmul %8, %16, %cst_15 {dimension_numbers = #tpu.dot_dimension_numbers<[1], [0], [0], [1], [0, 0, 1, 1], [], []>} : vector<16x32xf32>, vector<32x32xf32>, vector<16x32xf32> -> vector<16x32xf32>
    %c0_16 = arith.constant 0 : index
    %c0_17 = arith.constant 0 : index
    %18 = vector.load %arg7[%c0_16, %c0_17] : memref<32x32xf32, #tpu.memory_space<vmem>>, vector<32x32xf32>
    %cst_18 = arith.constant dense<0.000000e+00> : vector<16x32xf32>
    %19 = tpu.matmul %8, %18, %cst_18 {dimension_numbers = #tpu.dot_dimension_numbers<[1], [0], [0], [1], [0, 0, 1, 1], [], []>} : vector<16x32xf32>, vector<32x32xf32>, vector<16x32xf32> -> vector<16x32xf32>
    %c0_19 = arith.constant 0 : index
    %c0_20 = arith.constant 0 : index
    %20 = vector.load %arg4[%c0_19, %c0_20] : memref<8x32xf32, #tpu.memory_space<vmem>>, vector<8x32xf32>
    %c0_21 = arith.constant 0 : index
    %c0_22 = arith.constant 0 : index
    %21 = vector.load %arg5[%c0_21, %c0_22] : memref<32x32xf32, #tpu.memory_space<vmem>>, vector<32x32xf32>
    %cst_23 = arith.constant dense<0.000000e+00> : vector<8x32xf32>
    %22 = tpu.matmul %20, %21, %cst_23 {dimension_numbers = #tpu.dot_dimension_numbers<[1], [0], [0], [1], [0, 0, 1, 1], [], []>} : vector<8x32xf32>, vector<32x32xf32>, vector<8x32xf32> -> vector<8x32xf32>
    %23 = tpu.transpose %17, [1, 0] : vector<16x32xf32> -> vector<32x16xf32>
    %cst_24 = arith.constant dense<0.000000e+00> : vector<8x16xf32>
    %24 = tpu.matmul %22, %23, %cst_24 {dimension_numbers = #tpu.dot_dimension_numbers<[1], [0], [0], [1], [0, 0, 1, 1], [], []>} : vector<8x32xf32>, vector<32x16xf32>, vector<8x16xf32> -> vector<8x16xf32>
    %cst_25 = arith.constant 0.176776692 : f32
    %25 = vector.broadcast %cst_25 : f32 to vector<8x16xf32>
    %26 = arith.mulf %24, %25 : vector<8x16xf32>
    %cst_26 = arith.constant dense<0xFF800000> : vector<8xf32>
    %27 = vector.multi_reduction <maximumf>, %26, %cst_26 [1] : vector<8x16xf32> to vector<8xf32>
    %28 = vector.shape_cast %27 : vector<8xf32> to vector<8x1xf32>
    %29 = vector.broadcast %28 : vector<8x1xf32> to vector<8x16xf32>
    %30 = arith.subf %26, %29 : vector<8x16xf32>
    %31 = math.exp %30 : vector<8x16xf32>
    %cst_27 = arith.constant dense<0.000000e+00> : vector<8xf32>
    %32 = vector.multi_reduction <add>, %31, %cst_27 [1] : vector<8x16xf32> to vector<8xf32>
    %33 = vector.shape_cast %32 : vector<8xf32> to vector<8x1xf32>
    %34 = tpu.reciprocal %33 {approx = true} : vector<8x1xf32> -> vector<8x1xf32>
    %35 = vector.broadcast %34 : vector<8x1xf32> to vector<8x16xf32>
    %36 = arith.mulf %31, %35 : vector<8x16xf32>
    %cst_28 = arith.constant dense<0.000000e+00> : vector<8x32xf32>
    %37 = tpu.matmul %36, %19, %cst_28 {dimension_numbers = #tpu.dot_dimension_numbers<[1], [0], [0], [1], [0, 0, 1, 1], [], []>} : vector<8x16xf32>, vector<16x32xf32>, vector<8x32xf32> -> vector<8x32xf32>
    %38 = arith.addf %20, %37 : vector<8x32xf32>
    %c0_29 = arith.constant 0 : index
    %c0_30 = arith.constant 0 : index
    %39 = vector.load %arg11[%c0_29, %c0_30] : memref<32x6xf32, #tpu.memory_space<vmem>>, vector<32x6xf32>
    %cst_31 = arith.constant dense<0.000000e+00> : vector<8x6xf32>
    %40 = tpu.matmul %38, %39, %cst_31 {dimension_numbers = #tpu.dot_dimension_numbers<[1], [0], [0], [1], [0, 0, 1, 1], [], []>} : vector<8x32xf32>, vector<32x6xf32>, vector<8x6xf32> -> vector<8x6xf32>
    %c0_32 = arith.constant 0 : index
    %c0_33 = arith.constant 0 : index
    %41 = vector.load %arg12[%c0_32, %c0_33] : memref<1x6xf32, #tpu.memory_space<vmem>>, vector<1x6xf32>
    %42 = vector.broadcast %41 : vector<1x6xf32> to vector<8x6xf32>
    %43 = arith.addf %40, %42 : vector<8x6xf32>
    %cst_34 = arith.constant dense<0xFF800000> : vector<8xf32>
    %44 = vector.multi_reduction <maximumf>, %43, %cst_34 [1] : vector<8x6xf32> to vector<8xf32>
    %45 = vector.shape_cast %44 : vector<8xf32> to vector<8x1xf32>
    %46 = vector.broadcast %45 : vector<8x1xf32> to vector<8x6xf32>
    %47 = arith.subf %43, %46 : vector<8x6xf32>
    %48 = math.exp %47 : vector<8x6xf32>
    %cst_35 = arith.constant dense<0.000000e+00> : vector<8xf32>
    %49 = vector.multi_reduction <add>, %48, %cst_35 [1] : vector<8x6xf32> to vector<8xf32>
    %50 = vector.shape_cast %49 : vector<8xf32> to vector<8x1xf32>
    %51 = tpu.reciprocal %50 {approx = true} : vector<8x1xf32> -> vector<8x1xf32>
    %52 = vector.broadcast %51 : vector<8x1xf32> to vector<8x6xf32>
    %53 = arith.mulf %48, %52 : vector<8x6xf32>
    %cst_36 = arith.constant dense<0xFF800000> : vector<8xf32>
    %54 = vector.multi_reduction <maximumf>, %53, %cst_36 [1] : vector<8x6xf32> to vector<8xf32>
    %55 = vector.shape_cast %54 : vector<8xf32> to vector<8x1xf32>
    %56 = tpu.iota {dimensions = array<i32: 1>} : vector<8x6xi32>
    %57 = vector.broadcast %55 : vector<8x1xf32> to vector<8x6xf32>
    %58 = arith.cmpf oeq, %53, %57 : vector<8x6xf32>
    %c6_i32 = arith.constant 6 : i32
    %59 = vector.broadcast %c6_i32 : i32 to vector<8x6xi32>
    %60 = arith.select %58, %56, %59 : vector<8x6xi1>, vector<8x6xi32>
    %cst_37 = arith.constant dense<2147483647> : vector<8xi32>
    %61 = vector.multi_reduction <minsi>, %60, %cst_37 [1] : vector<8x6xi32> to vector<8xi32>
    %62 = vector.shape_cast %61 : vector<8xi32> to vector<8x1xi32>
    %c5_i32 = arith.constant 5 : i32
    %63 = vector.broadcast %c5_i32 : i32 to vector<8x1xi32>
    %64 = arith.cmpi ne, %62, %63 : vector<8x1xi32>
    %cst_38 = arith.constant 0.000000e+00 : f32
    %65 = vector.broadcast %cst_38 : f32 to vector<8x1xf32>
    %66 = arith.cmpf ogt, %55, %65 : vector<8x1xf32>
    %67 = arith.andi %64, %66 : vector<8x1xi1>
    %c0_39 = arith.constant 0 : index
    %c0_40 = arith.constant 0 : index
    %68 = vector.load %arg10[%c0_39, %c0_40] : memref<32x32xf32, #tpu.memory_space<vmem>>, vector<32x32xf32>
    %cst_41 = arith.constant dense<0.000000e+00> : vector<8x32xf32>
    %69 = tpu.matmul %38, %68, %cst_41 {dimension_numbers = #tpu.dot_dimension_numbers<[1], [0], [0], [1], [0, 0, 1, 1], [], []>} : vector<8x32xf32>, vector<32x32xf32>, vector<8x32xf32> -> vector<8x32xf32>
    %70 = tpu.transpose %15, [1, 0] : vector<16x32xf32> -> vector<32x16xf32>
    %cst_42 = arith.constant dense<0.000000e+00> : vector<8x16xf32>
    %71 = tpu.matmul %69, %70, %cst_42 {dimension_numbers = #tpu.dot_dimension_numbers<[1], [0], [0], [1], [0, 0, 1, 1], [], []>} : vector<8x32xf32>, vector<32x16xf32>, vector<8x16xf32> -> vector<8x16xf32>
    %c0_43 = arith.constant 0 : index
    %c0_44 = arith.constant 0 : index
    %72 = vector.load %arg13[%c0_43, %c0_44] : memref<16x256xf32, #tpu.memory_space<vmem>>, vector<16x256xf32>
    %cst_45 = arith.constant dense<0.000000e+00> : vector<8x256xf32>
    %73 = tpu.matmul %71, %72, %cst_45 {dimension_numbers = #tpu.dot_dimension_numbers<[1], [0], [0], [1], [0, 0, 1, 1], [], []>} : vector<8x16xf32>, vector<16x256xf32>, vector<8x256xf32> -> vector<8x256xf32>
    %cst_46 = arith.constant 0.000000e+00 : f32
    %74 = vector.broadcast %cst_46 : f32 to vector<8x256xf32>
    %75 = arith.subf %74, %73 : vector<8x256xf32>
    %76 = math.exp %75 : vector<8x256xf32>
    %cst_47 = arith.constant 1.000000e+00 : f32
    %77 = vector.broadcast %cst_47 : f32 to vector<8x256xf32>
    %78 = arith.addf %77, %76 : vector<8x256xf32>
    %79 = tpu.reciprocal %78 {approx = true} : vector<8x256xf32> -> vector<8x256xf32>
    %80 = vector.broadcast %55 : vector<8x1xf32> to vector<8x256xf32>
    %81 = arith.mulf %80, %79 : vector<8x256xf32>
    %cst_48 = arith.constant 0xFF800000 : f32
    %82 = vector.shape_cast %67 : vector<8x1xi1> to vector<8x1xi1>
    %83 = vector.broadcast %82 : vector<8x1xi1> to vector<8x256xi1>
    %84 = vector.broadcast %cst_48 : f32 to vector<8x256xf32>
    %85 = arith.select %83, %81, %84 : vector<8x256xi1>, vector<8x256xf32>
    %cst_49 = arith.constant dense<0xFF800000> : vector<256xf32>
    %86 = vector.multi_reduction <maximumf>, %85, %cst_49 [0] : vector<8x256xf32> to vector<256xf32>
    %87 = vector.shape_cast %86 : vector<256xf32> to vector<1x256xf32>
    %88 = tpu.iota {dimensions = array<i32: 0>} : vector<8x256xi32>
    %89 = vector.broadcast %87 : vector<1x256xf32> to vector<8x256xf32>
    %90 = arith.cmpf oeq, %85, %89 : vector<8x256xf32>
    %c8_i32 = arith.constant 8 : i32
    %91 = vector.broadcast %c8_i32 : i32 to vector<8x256xi32>
    %92 = arith.select %90, %88, %91 : vector<8x256xi1>, vector<8x256xi32>
    %cst_50 = arith.constant dense<2147483647> : vector<256xi32>
    %93 = vector.multi_reduction <minsi>, %92, %cst_50 [0] : vector<8x256xi32> to vector<256xi32>
    %94 = vector.shape_cast %93 : vector<256xi32> to vector<1x256xi32>
    %95 = tpu.iota {dimensions = array<i32: 1>} : vector<8x128xi32>
    %c0_i32 = arith.constant 0 : i32
    %96 = vector.broadcast %c0_i32 : i32 to vector<8x128xi32>
    %97 = arith.cmpi eq, %95, %96 : vector<8x128xi32>
    %cst_51 = arith.constant 0.000000e+00 : f32
    %98 = vector.shape_cast %55 : vector<8x1xf32> to vector<8x1xf32>
    %99 = vector.broadcast %98 : vector<8x1xf32> to vector<8x128xf32>
    %100 = vector.broadcast %cst_51 : f32 to vector<8x128xf32>
    %101 = arith.select %97, %99, %100 : vector<8x128xi1>, vector<8x128xf32>
    %c1_i32 = arith.constant 1 : i32
    %102 = vector.broadcast %c1_i32 : i32 to vector<8x128xi32>
    %103 = arith.cmpi eq, %95, %102 : vector<8x128xi32>
    %104 = arith.sitofp %62 : vector<8x1xi32> to vector<8x1xf32>
    %105 = vector.shape_cast %104 : vector<8x1xf32> to vector<8x1xf32>
    %106 = vector.broadcast %105 : vector<8x1xf32> to vector<8x128xf32>
    %107 = arith.select %103, %106, %101 : vector<8x128xi1>, vector<8x128xf32>
    %c2_i32 = arith.constant 2 : i32
    %108 = vector.broadcast %c2_i32 : i32 to vector<8x128xi32>
    %109 = arith.cmpi eq, %95, %108 : vector<8x128xi32>
    %cst_52 = arith.constant 1.000000e+00 : f32
    %cst_53 = arith.constant 0.000000e+00 : f32
    %110 = vector.broadcast %cst_52 : f32 to vector<8x1xf32>
    %111 = vector.broadcast %cst_53 : f32 to vector<8x1xf32>
    %112 = arith.select %67, %110, %111 : vector<8x1xi1>, vector<8x1xf32>
    %113 = vector.shape_cast %112 : vector<8x1xf32> to vector<8x1xf32>
    %114 = vector.broadcast %113 : vector<8x1xf32> to vector<8x128xf32>
    %115 = arith.select %109, %114, %107 : vector<8x128xi1>, vector<8x128xf32>
    %c0_54 = arith.constant 0 : index
    %c0_55 = arith.constant 0 : index
    %c0_56 = arith.constant 0 : index
    %116 = vector.load %arg14[%c0_54, %c0_55, %c0_56] : memref<1x8x128xf32, #tpu.memory_space<vmem>>, vector<1x8x128xf32>
    %117 = vector.shape_cast %116 : vector<1x8x128xf32> to vector<8x128xf32>
    %118 = vector.shape_cast %115 : vector<8x128xf32> to vector<1x8x128xf32>
    tpu.vector_store %arg14[%c0_54, %c0_55, %c0_56], %118 {strides = array<i32>} : memref<1x8x128xf32, #tpu.memory_space<vmem>>, vector<1x8x128xf32>,
    %c0_57 = arith.constant 0 : index
    %c0_58 = arith.constant 0 : index
    %c0_59 = arith.constant 0 : index
    %119 = vector.load %arg15[%c0_57, %c0_58, %c0_59] : memref<1x8x256xf32, #tpu.memory_space<vmem>>, vector<1x8x256xf32>
    %120 = vector.shape_cast %119 : vector<1x8x256xf32> to vector<8x256xf32>
    %121 = vector.shape_cast %73 : vector<8x256xf32> to vector<1x8x256xf32>
    tpu.vector_store %arg15[%c0_57, %c0_58, %c0_59], %121 {strides = array<i32>} : memref<1x8x256xf32, #tpu.memory_space<vmem>>, vector<1x8x256xf32>,
    %c0_60 = arith.constant 0 : index
    %c0_61 = arith.constant 0 : index
    %c0_62 = arith.constant 0 : index
    %122 = vector.load %arg16[%c0_60, %c0_61, %c0_62] : memref<1x8x256xf32, #tpu.memory_space<vmem>>, vector<1x8x256xf32>
    %123 = vector.shape_cast %122 : vector<1x8x256xf32> to vector<8x256xf32>
    %124 = vector.shape_cast %79 : vector<8x256xf32> to vector<1x8x256xf32>
    tpu.vector_store %arg16[%c0_60, %c0_61, %c0_62], %124 {strides = array<i32>} : memref<1x8x256xf32, #tpu.memory_space<vmem>>, vector<1x8x256xf32>,
    %c0_63 = arith.constant 0 : index
    %c0_64 = arith.constant 0 : index
    %c0_65 = arith.constant 0 : index
    %125 = vector.load %arg17[%c0_63, %c0_64, %c0_65] : memref<1x8x256xf32, #tpu.memory_space<vmem>>, vector<1x8x256xf32>
    %126 = vector.shape_cast %125 : vector<1x8x256xf32> to vector<8x256xf32>
    %127 = vector.shape_cast %81 : vector<8x256xf32> to vector<1x8x256xf32>
    tpu.vector_store %arg17[%c0_63, %c0_64, %c0_65], %127 {strides = array<i32>} : memref<1x8x256xf32, #tpu.memory_space<vmem>>, vector<1x8x256xf32>,
    %c0_66 = arith.constant 0 : index
    %c0_67 = arith.constant 0 : index
    %c0_68 = arith.constant 0 : index
    %128 = vector.load %arg18[%c0_66, %c0_67, %c0_68] : memref<1x1x256xi32, #tpu.memory_space<vmem>>, vector<1x1x256xi32>
    %129 = vector.shape_cast %128 : vector<1x1x256xi32> to vector<1x256xi32>
    %130 = vector.shape_cast %94 : vector<1x256xi32> to vector<1x1x256xi32>
    tpu.vector_store %arg18[%c0_66, %c0_67, %c0_68], %130 {strides = array<i32>} : memref<1x1x256xi32, #tpu.memory_space<vmem>>, vector<1x1x256xi32>,
    return
  }
  func.func @transform_0(%arg0: i32) -> (i32, i32, i32) {
    %c0_i32 = arith.constant 0 : i32
    %c0_i32_0 = arith.constant 0 : i32
    %c0_i32_1 = arith.constant 0 : i32
    return %arg0, %c0_i32, %c0_i32_0 : i32, i32, i32
  }
  func.func @transform_1(%arg0: i32) -> (i32, i32) {
    %c0_i32 = arith.constant 0 : i32
    %c0_i32_0 = arith.constant 0 : i32
    %c0_i32_1 = arith.constant 0 : i32
    return %c0_i32, %c0_i32_0 : i32, i32
  }
  func.func @transform_2(%arg0: i32) -> (i32, i32) {
    %c0_i32 = arith.constant 0 : i32
    %c0_i32_0 = arith.constant 0 : i32
    %c0_i32_1 = arith.constant 0 : i32
    return %c0_i32, %c0_i32_0 : i32, i32
  }
  func.func @transform_3(%arg0: i32) -> (i32, i32) {
    %c0_i32 = arith.constant 0 : i32
    %c0_i32_0 = arith.constant 0 : i32
    %c0_i32_1 = arith.constant 0 : i32
    return %c0_i32, %c0_i32_0 : i32, i32
  }
  func.func @transform_4(%arg0: i32) -> (i32, i32) {
    %c0_i32 = arith.constant 0 : i32
    %c0_i32_0 = arith.constant 0 : i32
    %c0_i32_1 = arith.constant 0 : i32
    return %c0_i32, %c0_i32_0 : i32, i32
  }
  func.func @transform_5(%arg0: i32) -> (i32, i32) {
    %c0_i32 = arith.constant 0 : i32
    %c0_i32_0 = arith.constant 0 : i32
    %c0_i32_1 = arith.constant 0 : i32
    return %c0_i32, %c0_i32_0 : i32, i32
  }
  func.func @transform_6(%arg0: i32) -> (i32, i32) {
    %c0_i32 = arith.constant 0 : i32
    %c0_i32_0 = arith.constant 0 : i32
    %c0_i32_1 = arith.constant 0 : i32
    return %c0_i32, %c0_i32_0 : i32, i32
  }
  func.func @transform_7(%arg0: i32) -> (i32, i32) {
    %c0_i32 = arith.constant 0 : i32
    %c0_i32_0 = arith.constant 0 : i32
    %c0_i32_1 = arith.constant 0 : i32
    return %c0_i32, %c0_i32_0 : i32, i32
  }
  func.func @transform_8(%arg0: i32) -> (i32, i32) {
    %c0_i32 = arith.constant 0 : i32
    %c0_i32_0 = arith.constant 0 : i32
    %c0_i32_1 = arith.constant 0 : i32
    return %c0_i32, %c0_i32_0 : i32, i32
  }
  func.func @transform_9(%arg0: i32) -> (i32, i32) {
    %c0_i32 = arith.constant 0 : i32
    %c0_i32_0 = arith.constant 0 : i32
    %c0_i32_1 = arith.constant 0 : i32
    return %c0_i32, %c0_i32_0 : i32, i32
  }
  func.func @transform_10(%arg0: i32) -> (i32, i32) {
    %c0_i32 = arith.constant 0 : i32
    %c0_i32_0 = arith.constant 0 : i32
    %c0_i32_1 = arith.constant 0 : i32
    return %c0_i32, %c0_i32_0 : i32, i32
  }
  func.func @transform_11(%arg0: i32) -> (i32, i32) {
    %c0_i32 = arith.constant 0 : i32
    %c0_i32_0 = arith.constant 0 : i32
    %c0_i32_1 = arith.constant 0 : i32
    return %c0_i32, %c0_i32_0 : i32, i32
  }
  func.func @transform_12(%arg0: i32) -> (i32, i32) {
    %c0_i32 = arith.constant 0 : i32
    %c0_i32_0 = arith.constant 0 : i32
    %c0_i32_1 = arith.constant 0 : i32
    return %c0_i32, %c0_i32_0 : i32, i32
  }
  func.func @transform_13(%arg0: i32) -> (i32, i32, i32) {
    %c0_i32 = arith.constant 0 : i32
    %c0_i32_0 = arith.constant 0 : i32
    %c0_i32_1 = arith.constant 0 : i32
    return %arg0, %c0_i32, %c0_i32_0 : i32, i32, i32
  }
  func.func @transform_14(%arg0: i32) -> (i32, i32, i32) {
    %c0_i32 = arith.constant 0 : i32
    %c0_i32_0 = arith.constant 0 : i32
    %c0_i32_1 = arith.constant 0 : i32
    return %arg0, %c0_i32, %c0_i32_0 : i32, i32, i32
  }
  func.func @transform_15(%arg0: i32) -> (i32, i32, i32) {
    %c0_i32 = arith.constant 0 : i32
    %c0_i32_0 = arith.constant 0 : i32
    %c0_i32_1 = arith.constant 0 : i32
    return %arg0, %c0_i32, %c0_i32_0 : i32, i32, i32
  }
  func.func @transform_16(%arg0: i32) -> (i32, i32, i32) {
    %c0_i32 = arith.constant 0 : i32
    %c0_i32_0 = arith.constant 0 : i32
    %c0_i32_1 = arith.constant 0 : i32
    return %arg0, %c0_i32, %c0_i32_0 : i32, i32, i32
  }
  func.func @transform_17(%arg0: i32) -> (i32, i32, i32) {
    %c0_i32 = arith.constant 0 : i32
    %c0_i32_0 = arith.constant 0 : i32
    %c0_i32_1 = arith.constant 0 : i32
    return %arg0, %c0_i32, %c0_i32_0 : i32, i32, i32
  }
}

</mosaic_0001>

<llo_original>
// kernel: teacher_device.1
$region0: #{teacher_device.1}
  #allocation0 [shape = 'u32[]', space=smem, size = 0x4, offset = 0x4, fixed_abs, tag = 'smem constant byte address 0x4 - core index']
  #allocation1 [shape = 'u32[72,128]{1,0:T(1,128)}', space=vmem, size = 0x9000, scoped, tag = 'internal scratch']
  %s0 = inlined_call_operand.vmem [shape: f32[2,16,128], index: 0, kind: input, shape index: {}]
  %s1 = inlined_call_operand.vmem [shape: f32[128,32], index: 1, kind: input, shape index: {}]
  %s2 = inlined_call_operand.vmem [shape: f32[1,32], index: 2, kind: input, shape index: {}]
  %s3 = inlined_call_operand.vmem [shape: f32[8,32], index: 3, kind: input, shape index: {}]
  %s4 = inlined_call_operand.vmem [shape: f32[32,32], index: 4, kind: input, shape index: {}]
  %s5 = inlined_call_operand.vmem [shape: f32[32,32], index: 5, kind: input, shape index: {}]
  %s6 = inlined_call_operand.vmem [shape: f32[32,32], index: 6, kind: input, shape index: {}]
  %s7 = inlined_call_operand.vmem [shape: f32[32,32], index: 7, kind: input, shape index: {}]
  %s8 = inlined_call_operand.vmem [shape: f32[1,32], index: 8, kind: input, shape index: {}]
  %s9 = inlined_call_operand.vmem [shape: f32[32,32], index: 9, kind: input, shape index: {}]
  %s10 = inlined_call_operand.vmem [shape: f32[32,6], index: 10, kind: input, shape index: {}]
  %s11 = inlined_call_operand.vmem [shape: f32[1,6], index: 11, kind: input, shape index: {}]
  %s12 = inlined_call_operand.vmem [shape: f32[16,256], index: 12, kind: input, shape index: {}]
  %s13 = inlined_call_operand.hbm [shape: f32[2,8,128], index: 13, kind: output, shape index: {0}]
  %s14 = inlined_call_operand.hbm [shape: f32[2,8,256], index: 14, kind: output, shape index: {1}]
  %s15 = inlined_call_operand.hbm [shape: f32[2,8,256], index: 15, kind: output, shape index: {2}]
  %s16 = inlined_call_operand.hbm [shape: f32[2,8,256], index: 16, kind: output, shape index: {3}]
  %s17 = inlined_call_operand.hbm [shape: s32[2,1,256], index: 17, kind: output, shape index: {4}]
  %18 = xla_tuple %s13, %s14, %s15, %s16, %s17
  %s19 = sld [smem:[#allocation0]]
  $region117: #{teacher_device.1} parent=0
    _
  %s21 = ssub.s32 1, %s19
  %s22 = scalar_select 0, %s21, %s19
  $region1: #{teacher_device.1} parent=0
    #allocation2 [shape = 'u8[8192]{0}', space=vmem, size = 0x2000, scoped, tag = 'output window, operand 0']
    #allocation3 [shape = 's32[2]{0}', space=sflag, size = 0x8, scoped, tag = 'scoped memory for teacher_device.1']
    #allocation4 [shape = 'u8[16384]{0}', space=vmem, size = 0x4000, scoped, tag = 'output window, operand 1']
    #allocation5 [shape = 's32[2]{0}', space=sflag, size = 0x8, scoped, tag = 'scoped memory for teacher_device.1']
    #allocation6 [shape = 'u8[16384]{0}', space=vmem, size = 0x4000, scoped, tag = 'output window, operand 2']
    #allocation7 [shape = 'u8[16384]{0}', space=vmem, size = 0x4000, scoped, tag = 'output window, operand 3']
    #allocation8 [shape = 's32[2]{0}', space=sflag, size = 0x8, scoped, tag = 'scoped memory for teacher_device.1']
    #allocation9 [shape = 'u8[2048]{0}', space=vmem, size = 0x800, scoped, tag = 'output window, operand 4']
    %23 = vsyncpa [#allocation3], 0
    %s24 = scalar_lea.sflag [#allocation3], 1
    %25 = vsyncpa %s24, 0
    %26 = vsyncpa [#allocation5], 0
    %s27 = scalar_lea.sflag [#allocation5], 1
    %28 = vsyncpa %s27, 0
    %29 = vsyncpa [#allocation8], 0
    %s30 = scalar_lea.sflag [#allocation8], 1
    %31 = vsyncpa %s30, 0
    loop: start=0, step=1, limit=4
    $region2: #{teacher_device.1} parent=1 // loop_pre_header
      _
    $region3: #{teacher_device.1} parent=1 // loop_header
      %s33 = sphi 0, %s37
      %p34 = scmp.ge.s32.totalorder %s33, 4
      %s43 = sphi 0, %s45
      %s46 = sphi 0, %s43
      %s47 = sphi 0, %s46
      %s63 = sphi 0, %s47
      %s67 = sphi 0, %s67
      %s69 = sphi 0, %s67
      %s70 = sphi 0, %s69
      %s84 = sphi 0, %s70
      %s88 = sphi 0, %s88
      %s90 = sphi 0, %s88
      %s91 = sphi 0, %s90
      %s105 = sphi 0, %s91
      %s109 = sphi 0, %s109
      %s111 = sphi 0, %s109
      %s112 = sphi 0, %s111
      %s126 = sphi 0, %s112
      %s130 = sphi 0, %s130
      %s132 = sphi 0, %s130
      %s133 = sphi 0, %s132
      %s147 = sphi 0, %s133
      %s151 = sphi 0, %s151
      %s153 = sphi 0, %s151
      %s154 = sphi 0, %s153
      %s168 = sphi 0, %s154
      %s172 = sphi 0, %s172
      %s174 = sphi 0, %s172
      %s175 = sphi 0, %s174
      %s189 = sphi 0, %s175
      %s193 = sphi 0, %s193
      %s195 = sphi 0, %s193
      %s196 = sphi 0, %s195
      %s210 = sphi 0, %s196
      %s214 = sphi 0, %s214
      %s216 = sphi 0, %s214
      %s217 = sphi 0, %s216
      %s231 = sphi 0, %s217
      %s235 = sphi 0, %s235
      %s237 = sphi 0, %s235
      %s238 = sphi 0, %s237
      %s252 = sphi 0, %s238
      %s256 = sphi 0, %s256
      %s258 = sphi 0, %s256
      %s259 = sphi 0, %s258
      %s273 = sphi 0, %s259
      %s277 = sphi 0, %s277
      %s279 = sphi 0, %s277
      %s280 = sphi 0, %s279
      %s294 = sphi 0, %s280
      %s298 = sphi 0, %s298
      %s300 = sphi 0, %s298
      %s301 = sphi 0, %s300
      %s315 = sphi 0, %s301
      %s321 = sphi 0, %s323
      %s324 = sphi 0, %s321
      %s325 = sphi 0, %s324
      %s341 = sphi 0, %s325
      %s347 = sphi 0, %s349
      %s350 = sphi 0, %s347
      %s351 = sphi 0, %s350
      %s367 = sphi 0, %s351
      %s373 = sphi 0, %s375
      %s376 = sphi 0, %s373
      %s377 = sphi 0, %s376
      %s393 = sphi 0, %s377
      %s399 = sphi 0, %s401
      %s402 = sphi 0, %s399
      %s403 = sphi 0, %s402
      %s419 = sphi 0, %s403
      %s425 = sphi 0, %s427
      %s428 = sphi 0, %s425
      %s429 = sphi 0, %s428
      %s445 = sphi 0, %s429
    $region4: #{teacher_device.1} parent=1 // loop_header_branch
      %36 = sbr.rel (%p34) target = $region8
    $region5: #{teacher_device.1} parent=1 // loop_body
      %s38 = ssub.s32 %s33, 1
      %s39 = ssub.s32 %s33, 2
      %s40 = sadd.s32 %s33, 1
      %s41 = ssub.s32 %s33, %s40
      %p42 = scmp.eq.s32.totalorder %s41, 0
      %s44 = sadd.s32 %s43, 1
      %s45 = scalar_select %p42, %s43, %s44
      %p48 = pneg %p42
      %p49 = scmp.eq.s32.totalorder %s33, 1
      %p50 = por %p48, %p49
      %p51 = scmp.ne.s32.totalorder %s43, %s46
      %p52 = scmp.eq.s32.totalorder %s33, 0
      %p53 = por %p51, %p52
      %p54 = scmp.ne.s32.totalorder %s43, %s46
      %p55 = scmp.eq.s32.totalorder %s38, 1
      %p56 = por %p54, %p55
      %p57 = scmp.ne.s32.totalorder %s46, %s47
      %p58 = scmp.eq.s32.totalorder %s38, 0
      %p59 = por %p57, %p58
      %p60 = scmp.ne.s32.totalorder %s46, %s47
      %p61 = scmp.eq.s32.totalorder %s39, 1
      %p62 = por %p60, %p61
      %p64 = scmp.ne.s32.totalorder %s47, %s63
      %p65 = scmp.eq.s32.totalorder %s39, 0
      %p66 = por %p64, %p65
      %s68 = sadd.s32 %s67, 1
      %p71 = scmp.eq.s32.totalorder %s33, 1
      %p72 = scmp.ne.s32.totalorder %s67, %s69
      %p73 = scmp.eq.s32.totalorder %s33, 0
      %p74 = por %p72, %p73
      %p75 = scmp.ne.s32.totalorder %s67, %s69
      %p76 = scmp.eq.s32.totalorder %s38, 1
      %p77 = por %p75, %p76
      %p78 = scmp.ne.s32.totalorder %s69, %s70
      %p79 = scmp.eq.s32.totalorder %s38, 0
      %p80 = por %p78, %p79
      %p81 = scmp.ne.s32.totalorder %s69, %s70
      %p82 = scmp.eq.s32.totalorder %s39, 1
      %p83 = por %p81, %p82
      %p85 = scmp.ne.s32.totalorder %s70, %s84
      %p86 = scmp.eq.s32.totalorder %s39, 0
      %p87 = por %p85, %p86
      %s89 = sadd.s32 %s88, 1
      %p92 = scmp.eq.s32.totalorder %s33, 1
      %p93 = scmp.ne.s32.totalorder %s88, %s90
      %p94 = scmp.eq.s32.totalorder %s33, 0
      %p95 = por %p93, %p94
      %p96 = scmp.ne.s32.totalorder %s88, %s90
      %p97 = scmp.eq.s32.totalorder %s38, 1
      %p98 = por %p96, %p97
      %p99 = scmp.ne.s32.totalorder %s90, %s91
      %p100 = scmp.eq.s32.totalorder %s38, 0
      %p101 = por %p99, %p100
      %p102 = scmp.ne.s32.totalorder %s90, %s91
      %p103 = scmp.eq.s32.totalorder %s39, 1
      %p104 = por %p102, %p103
      %p106 = scmp.ne.s32.totalorder %s91, %s105
      %p107 = scmp.eq.s32.totalorder %s39, 0
      %p108 = por %p106, %p107
      %s110 = sadd.s32 %s109, 1
      %p113 = scmp.eq.s32.totalorder %s33, 1
      %p114 = scmp.ne.s32.totalorder %s109, %s111
      %p115 = scmp.eq.s32.totalorder %s33, 0
      %p116 = por %p114, %p115
      %p117 = scmp.ne.s32.totalorder %s109, %s111
      %p118 = scmp.eq.s32.totalorder %s38, 1
      %p119 = por %p117, %p118
      %p120 = scmp.ne.s32.totalorder %s111, %s112
      %p121 = scmp.eq.s32.totalorder %s38, 0
      %p122 = por %p120, %p121
      %p123 = scmp.ne.s32.totalorder %s111, %s112
      %p124 = scmp.eq.s32.totalorder %s39, 1
      %p125 = por %p123, %p124
      %p127 = scmp.ne.s32.totalorder %s112, %s126
      %p128 = scmp.eq.s32.totalorder %s39, 0
      %p129 = por %p127, %p128
      %s131 = sadd.s32 %s130, 1
      %p134 = scmp.eq.s32.totalorder %s33, 1
      %p135 = scmp.ne.s32.totalorder %s130, %s132
      %p136 = scmp.eq.s32.totalorder %s33, 0
      %p137 = por %p135, %p136
      %p138 = scmp.ne.s32.totalorder %s130, %s132
      %p139 = scmp.eq.s32.totalorder %s38, 1
      %p140 = por %p138, %p139
      %p141 = scmp.ne.s32.totalorder %s132, %s133
      %p142 = scmp.eq.s32.totalorder %s38, 0
      %p143 = por %p141, %p142
      %p144 = scmp.ne.s32.totalorder %s132, %s133
      %p145 = scmp.eq.s32.totalorder %s39, 1
      %p146 = por %p144, %p145
      %p148 = scmp.ne.s32.totalorder %s133, %s147
      %p149 = scmp.eq.s32.totalorder %s39, 0
      %p150 = por %p148, %p149
      %s152 = sadd.s32 %s151, 1
      %p155 = scmp.eq.s32.totalorder %s33, 1
      %p156 = scmp.ne.s32.totalorder %s151, %s153
      %p157 = scmp.eq.s32.totalorder %s33, 0
      %p158 = por %p156, %p157
      %p159 = scmp.ne.s32.totalorder %s151, %s153
      %p160 = scmp.eq.s32.totalorder %s38, 1
      %p161 = por %p159, %p160
      %p162 = scmp.ne.s32.totalorder %s153, %s154
      %p163 = scmp.eq.s32.totalorder %s38, 0
      %p164 = por %p162, %p163
      %p165 = scmp.ne.s32.totalorder %s153, %s154
      %p166 = scmp.eq.s32.totalorder %s39, 1
      %p167 = por %p165, %p166
      %p169 = scmp.ne.s32.totalorder %s154, %s168
      %p170 = scmp.eq.s32.totalorder %s39, 0
      %p171 = por %p169, %p170
      %s173 = sadd.s32 %s172, 1
      %p176 = scmp.eq.s32.totalorder %s33, 1
      %p177 = scmp.ne.s32.totalorder %s172, %s174
      %p178 = scmp.eq.s32.totalorder %s33, 0
      %p179 = por %p177, %p178
      %p180 = scmp.ne.s32.totalorder %s172, %s174
      %p181 = scmp.eq.s32.totalorder %s38, 1
      %p182 = por %p180, %p181
      %p183 = scmp.ne.s32.totalorder %s174, %s175
      %p184 = scmp.eq.s32.totalorder %s38, 0
      %p185 = por %p183, %p184
      %p186 = scmp.ne.s32.totalorder %s174, %s175
      %p187 = scmp.eq.s32.totalorder %s39, 1
      %p188 = por %p186, %p187
      %p190 = scmp.ne.s32.totalorder %s175, %s189
      %p191 = scmp.eq.s32.totalorder %s39, 0
      %p192 = por %p190, %p191
      %s194 = sadd.s32 %s193, 1
      %p197 = scmp.eq.s32.totalorder %s33, 1
      %p198 = scmp.ne.s32.totalorder %s193, %s195
      %p199 = scmp.eq.s32.totalorder %s33, 0
      %p200 = por %p198, %p199
      %p201 = scmp.ne.s32.totalorder %s193, %s195
      %p202 = scmp.eq.s32.totalorder %s38, 1
      %p203 = por %p201, %p202
      %p204 = scmp.ne.s32.totalorder %s195, %s196
      %p205 = scmp.eq.s32.totalorder %s38, 0
      %p206 = por %p204, %p205
      %p207 = scmp.ne.s32.totalorder %s195, %s196
      %p208 = scmp.eq.s32.totalorder %s39, 1
      %p209 = por %p207, %p208
      %p211 = scmp.ne.s32.totalorder %s196, %s210
      %p212 = scmp.eq.s32.totalorder %s39, 0
      %p213 = por %p211, %p212
      %s215 = sadd.s32 %s214, 1
      %p218 = scmp.eq.s32.totalorder %s33, 1
      %p219 = scmp.ne.s32.totalorder %s214, %s216
      %p220 = scmp.eq.s32.totalorder %s33, 0
      %p221 = por %p219, %p220
      %p222 = scmp.ne.s32.totalorder %s214, %s216
      %p223 = scmp.eq.s32.totalorder %s38, 1
      %p224 = por %p222, %p223
      %p225 = scmp.ne.s32.totalorder %s216, %s217
      %p226 = scmp.eq.s32.totalorder %s38, 0
      %p227 = por %p225, %p226
      %p228 = scmp.ne.s32.totalorder %s216, %s217
      %p229 = scmp.eq.s32.totalorder %s39, 1
      %p230 = por %p228, %p229
      %p232 = scmp.ne.s32.totalorder %s217, %s231
      %p233 = scmp.eq.s32.totalorder %s39, 0
      %p234 = por %p232, %p233
      %s236 = sadd.s32 %s235, 1
      %p239 = scmp.eq.s32.totalorder %s33, 1
      %p240 = scmp.ne.s32.totalorder %s235, %s237
      %p241 = scmp.eq.s32.totalorder %s33, 0
      %p242 = por %p240, %p241
      %p243 = scmp.ne.s32.totalorder %s235, %s237
      %p244 = scmp.eq.s32.totalorder %s38, 1
      %p245 = por %p243, %p244
      %p246 = scmp.ne.s32.totalorder %s237, %s238
      %p247 = scmp.eq.s32.totalorder %s38, 0
      %p248 = por %p246, %p247
      %p249 = scmp.ne.s32.totalorder %s237, %s238
      %p250 = scmp.eq.s32.totalorder %s39, 1
      %p251 = por %p249, %p250
      %p253 = scmp.ne.s32.totalorder %s238, %s252
      %p254 = scmp.eq.s32.totalorder %s39, 0
      %p255 = por %p253, %p254
      %s257 = sadd.s32 %s256, 1
      %p260 = scmp.eq.s32.totalorder %s33, 1
      %p261 = scmp.ne.s32.totalorder %s256, %s258
      %p262 = scmp.eq.s32.totalorder %s33, 0
      %p263 = por %p261, %p262
      %p264 = scmp.ne.s32.totalorder %s256, %s258
      %p265 = scmp.eq.s32.totalorder %s38, 1
      %p266 = por %p264, %p265
      %p267 = scmp.ne.s32.totalorder %s258, %s259
      %p268 = scmp.eq.s32.totalorder %s38, 0
      %p269 = por %p267, %p268
      %p270 = scmp.ne.s32.totalorder %s258, %s259
      %p271 = scmp.eq.s32.totalorder %s39, 1
      %p272 = por %p270, %p271
      %p274 = scmp.ne.s32.totalorder %s259, %s273
      %p275 = scmp.eq.s32.totalorder %s39, 0
      %p276 = por %p274, %p275
      %s278 = sadd.s32 %s277, 1
      %p281 = scmp.eq.s32.totalorder %s33, 1
      %p282 = scmp.ne.s32.totalorder %s277, %s279
      %p283 = scmp.eq.s32.totalorder %s33, 0
      %p284 = por %p282, %p283
      %p285 = scmp.ne.s32.totalorder %s277, %s279
      %p286 = scmp.eq.s32.totalorder %s38, 1
      %p287 = por %p285, %p286
      %p288 = scmp.ne.s32.totalorder %s279, %s280
      %p289 = scmp.eq.s32.totalorder %s38, 0
      %p290 = por %p288, %p289
      %p291 = scmp.ne.s32.totalorder %s279, %s280
      %p292 = scmp.eq.s32.totalorder %s39, 1
      %p293 = por %p291, %p292
      %p295 = scmp.ne.s32.totalorder %s280, %s294
      %p296 = scmp.eq.s32.totalorder %s39, 0
      %p297 = por %p295, %p296
      %s299 = sadd.s32 %s298, 1
      %p302 = scmp.eq.s32.totalorder %s33, 1
      %p303 = scmp.ne.s32.totalorder %s298, %s300
      %p304 = scmp.eq.s32.totalorder %s33, 0
      %p305 = por %p303, %p304
      %p306 = scmp.ne.s32.totalorder %s298, %s300
      %p307 = scmp.eq.s32.totalorder %s38, 1
      %p308 = por %p306, %p307
      %p309 = scmp.ne.s32.totalorder %s300, %s301
      %p310 = scmp.eq.s32.totalorder %s38, 0
      %p311 = por %p309, %p310
      %p312 = scmp.ne.s32.totalorder %s300, %s301
      %p313 = scmp.eq.s32.totalorder %s39, 1
      %p314 = por %p312, %p313
      %p316 = scmp.ne.s32.totalorder %s301, %s315
      %p317 = scmp.eq.s32.totalorder %s39, 0
      %p318 = por %p316, %p317
      %s319 = ssub.s32 %s33, %s40
      %p320 = scmp.eq.s32.totalorder %s319, 0
      %s322 = sadd.s32 %s321, 1
      %s323 = scalar_select %p320, %s321, %s322
      %p326 = pneg %p320
      %p327 = scmp.eq.s32.totalorder %s33, 1
      %p328 = por %p326, %p327
      %p329 = scmp.ne.s32.totalorder %s321, %s324
      %p330 = scmp.eq.s32.totalorder %s33, 0
      %p331 = por %p329, %p330
      %p332 = scmp.ne.s32.totalorder %s321, %s324
      %p333 = scmp.eq.s32.totalorder %s38, 1
      %p334 = por %p332, %p333
      %p335 = scmp.ne.s32.totalorder %s324, %s325
      %p336 = scmp.eq.s32.totalorder %s38, 0
      %p337 = por %p335, %p336
      %p338 = scmp.ne.s32.totalorder %s324, %s325
      %p339 = scmp.eq.s32.totalorder %s39, 1
      %p340 = por %p338, %p339
      %p342 = scmp.ne.s32.totalorder %s325, %s341
      %p343 = scmp.eq.s32.totalorder %s39, 0
      %p344 = por %p342, %p343
      %s345 = ssub.s32 %s33, %s40
      %p346 = scmp.eq.s32.totalorder %s345, 0
      %s348 = sadd.s32 %s347, 1
      %s349 = scalar_select %p346, %s347, %s348
      %p352 = pneg %p346
      %p353 = scmp.eq.s32.totalorder %s33, 1
      %p354 = por %p352, %p353
      %p355 = scmp.ne.s32.totalorder %s347, %s350
      %p356 = scmp.eq.s32.totalorder %s33, 0
      %p357 = por %p355, %p356
      %p358 = scmp.ne.s32.totalorder %s347, %s350
      %p359 = scmp.eq.s32.totalorder %s38, 1
      %p360 = por %p358, %p359
      %p361 = scmp.ne.s32.totalorder %s350, %s351
      %p362 = scmp.eq.s32.totalorder %s38, 0
      %p363 = por %p361, %p362
      %p364 = scmp.ne.s32.totalorder %s350, %s351
      %p365 = scmp.eq.s32.totalorder %s39, 1
      %p366 = por %p364, %p365
      %p368 = scmp.ne.s32.totalorder %s351, %s367
      %p369 = scmp.eq.s32.totalorder %s39, 0
      %p370 = por %p368, %p369
      %s371 = ssub.s32 %s33, %s40
      %p372 = scmp.eq.s32.totalorder %s371, 0
      %s374 = sadd.s32 %s373, 1
      %s375 = scalar_select %p372, %s373, %s374
      %p378 = pneg %p372
      %p379 = scmp.eq.s32.totalorder %s33, 1
      %p380 = por %p378, %p379
      %p381 = scmp.ne.s32.totalorder %s373, %s376
      %p382 = scmp.eq.s32.totalorder %s33, 0
      %p383 = por %p381, %p382
      %p384 = scmp.ne.s32.totalorder %s373, %s376
      %p385 = scmp.eq.s32.totalorder %s38, 1
      %p386 = por %p384, %p385
      %p387 = scmp.ne.s32.totalorder %s376, %s377
      %p388 = scmp.eq.s32.totalorder %s38, 0
      %p389 = por %p387, %p388
      %p390 = scmp.ne.s32.totalorder %s376, %s377
      %p391 = scmp.eq.s32.totalorder %s39, 1
      %p392 = por %p390, %p391
      %p394 = scmp.ne.s32.totalorder %s377, %s393
      %p395 = scmp.eq.s32.totalorder %s39, 0
      %p396 = por %p394, %p395
      %s397 = ssub.s32 %s33, %s40
      %p398 = scmp.eq.s32.totalorder %s397, 0
      %s400 = sadd.s32 %s399, 1
      %s401 = scalar_select %p398, %s399, %s400
      %p404 = pneg %p398
      %p405 = scmp.eq.s32.totalorder %s33, 1
      %p406 = por %p404, %p405
      %p407 = scmp.ne.s32.totalorder %s399, %s402
      %p408 = scmp.eq.s32.totalorder %s33, 0
      %p409 = por %p407, %p408
      %p410 = scmp.ne.s32.totalorder %s399, %s402
      %p411 = scmp.eq.s32.totalorder %s38, 1
      %p412 = por %p410, %p411
      %p413 = scmp.ne.s32.totalorder %s402, %s403
      %p414 = scmp.eq.s32.totalorder %s38, 0
      %p415 = por %p413, %p414
      %p416 = scmp.ne.s32.totalorder %s402, %s403
      %p417 = scmp.eq.s32.totalorder %s39, 1
      %p418 = por %p416, %p417
      %p420 = scmp.ne.s32.totalorder %s403, %s419
      %p421 = scmp.eq.s32.totalorder %s39, 0
      %p422 = por %p420, %p421
      %s423 = ssub.s32 %s33, %s40
      %p424 = scmp.eq.s32.totalorder %s423, 0
      %s426 = sadd.s32 %s425, 1
      %s427 = scalar_select %p424, %s425, %s426
      %p430 = pneg %p424
      %p431 = scmp.eq.s32.totalorder %s33, 1
      %p432 = por %p430, %p431
      %p433 = scmp.ne.s32.totalorder %s425, %s428
      %p434 = scmp.eq.s32.totalorder %s33, 0
      %p435 = por %p433, %p434
      %p436 = scmp.ne.s32.totalorder %s425, %s428
      %p437 = scmp.eq.s32.totalorder %s38, 1
      %p438 = por %p436, %p437
      %p439 = scmp.ne.s32.totalorder %s428, %s429
      %p440 = scmp.eq.s32.totalorder %s38, 0
      %p441 = por %p439, %p440
      %p442 = scmp.ne.s32.totalorder %s428, %s429
      %p443 = scmp.eq.s32.totalorder %s39, 1
      %p444 = por %p442, %p443
      %p446 = scmp.ne.s32.totalorder %s429, %s445
      %p447 = scmp.eq.s32.totalorder %s39, 0
      %p448 = por %p446, %p447
      %p449 = scmp.le.s32.totalorder 1, %s33
      %p450 = scmp.lt.s32.totalorder %s33, 3
      %p451 = pnand %p449, %p450
      %p452 = pneg %p451
      // Predicated region
      $region9: #{teacher_device.1} parent=5 // pred_check
        _
      $region10: #{teacher_device.1} parent=5 // pred_check_branch
        %454 = sbr.rel (%p451) target = $region12
      $region11: #{teacher_device.1} parent=5 // pred_region
        %s455 = ssub.s32 %s33, 1
        // Predicated region
        $region13: #{teacher_device.1} parent=11 // pred_check
          %p456 = pneg %p80
        $region14: #{teacher_device.1} parent=11 // pred_check_branch
          %458 = sbr.rel (%p456) target = $region16
        $region15: #{teacher_device.1} parent=11 // pred_region
          _
        $region16: #{teacher_device.1} parent=11 // pred_fallthru
          _
        // Predicated region
        $region17: #{teacher_device.1} parent=11 // pred_check
          %p459 = pneg %p101
        $region18: #{teacher_device.1} parent=11 // pred_check_branch
          %461 = sbr.rel (%p459) target = $region20
        $region19: #{teacher_device.1} parent=11 // pred_region
          _
        $region20: #{teacher_device.1} parent=11 // pred_fallthru
          _
        // Predicated region
        $region21: #{teacher_device.1} parent=11 // pred_check
          %p462 = pneg %p122
        $region22: #{teacher_device.1} parent=11 // pred_check_branch
          %464 = sbr.rel (%p462) target = $region24
        $region23: #{teacher_device.1} parent=11 // pred_region
          _
        $region24: #{teacher_device.1} parent=11 // pred_fallthru
          _
        // Predicated region
        $region25: #{teacher_device.1} parent=11 // pred_check
          %p465 = pneg %p143
        $region26: #{teacher_device.1} parent=11 // pred_check_branch
          %467 = sbr.rel (%p465) target = $region28
        $region27: #{teacher_device.1} parent=11 // pred_region
          _
        $region28: #{teacher_device.1} parent=11 // pred_fallthru
          _
        // Predicated region
        $region29: #{teacher_device.1} parent=11 // pred_check
          %p468 = pneg %p164
        $region30: #{teacher_device.1} parent=11 // pred_check_branch
          %470 = sbr.rel (%p468) target = $region32
        $region31: #{teacher_device.1} parent=11 // pred_region
          _
        $region32: #{teacher_device.1} parent=11 // pred_fallthru
          _
        // Predicated region
        $region33: #{teacher_device.1} parent=11 // pred_check
          %p471 = pneg %p185
        $region34: #{teacher_device.1} parent=11 // pred_check_branch
          %473 = sbr.rel (%p471) target = $region36
        $region35: #{teacher_device.1} parent=11 // pred_region
          _
        $region36: #{teacher_device.1} parent=11 // pred_fallthru
          _
        // Predicated region
        $region37: #{teacher_device.1} parent=11 // pred_check
          %p474 = pneg %p206
        $region38: #{teacher_device.1} parent=11 // pred_check_branch
          %476 = sbr.rel (%p474) target = $region40
        $region39: #{teacher_device.1} parent=11 // pred_region
          _
        $region40: #{teacher_device.1} parent=11 // pred_fallthru
          _
        // Predicated region
        $region41: #{teacher_device.1} parent=11 // pred_check
          %p477 = pneg %p227
        $region42: #{teacher_device.1} parent=11 // pred_check_branch
          %479 = sbr.rel (%p477) target = $region44
        $region43: #{teacher_device.1} parent=11 // pred_region
          _
        $region44: #{teacher_device.1} parent=11 // pred_fallthru
          _
        // Predicated region
        $region45: #{teacher_device.1} parent=11 // pred_check
          %p480 = pneg %p248
        $region46: #{teacher_device.1} parent=11 // pred_check_branch
          %482 = sbr.rel (%p480) target = $region48
        $region47: #{teacher_device.1} parent=11 // pred_region
          _
        $region48: #{teacher_device.1} parent=11 // pred_fallthru
          _
        // Predicated region
        $region49: #{teacher_device.1} parent=11 // pred_check
          %p483 = pneg %p269
        $region50: #{teacher_device.1} parent=11 // pred_check_branch
          %485 = sbr.rel (%p483) target = $region52
        $region51: #{teacher_device.1} parent=11 // pred_region
          _
        $region52: #{teacher_device.1} parent=11 // pred_fallthru
          _
        // Predicated region
        $region53: #{teacher_device.1} parent=11 // pred_check
          %p486 = pneg %p290
        $region54: #{teacher_device.1} parent=11 // pred_check_branch
          %488 = sbr.rel (%p486) target = $region56
        $region55: #{teacher_device.1} parent=11 // pred_region
          _
        $region56: #{teacher_device.1} parent=11 // pred_fallthru
          _
        // Predicated region
        $region57: #{teacher_device.1} parent=11 // pred_check
          %p489 = pneg %p311
        $region58: #{teacher_device.1} parent=11 // pred_check_branch
          %491 = sbr.rel (%p489) target = $region60
        $region59: #{teacher_device.1} parent=11 // pred_region
          _
        $region60: #{teacher_device.1} parent=11 // pred_fallthru
          _
      $region12: #{teacher_device.1} parent=5 // pred_fallthru
        _
      %p492 = scmp.lt.s32.totalorder %s33, 2
      // Predicated region
      $region61: #{teacher_device.1} parent=5 // pred_check
        %p493 = pneg %p492
      $region62: #{teacher_device.1} parent=5 // pred_check_branch
        %495 = sbr.rel (%p493) target = $region64
      $region63: #{teacher_device.1} parent=5 // pred_region
        // Predicated region
        $region65: #{teacher_device.1} parent=63 // pred_check
          %p496 = pneg %p53
        $region66: #{teacher_device.1} parent=63 // pred_check_branch
          %498 = sbr.rel (%p496) target = $region68
        $region67: #{teacher_device.1} parent=63 // pred_region
          %p499 = scmp.lt.s32.totalorder %s33, 1
          %s500 = scalar_select %p499, %s33, 1
          %s501 = smul.addr %s500, 2
          %s502 = smul.addr %s501, 8
          %s503 = scalar_lea.vmem %s0, %s502
        $region68: #{teacher_device.1} parent=63 // pred_fallthru
          _
      $region64: #{teacher_device.1} parent=5 // pred_fallthru
        _
      %p504 = scmp.le.s32.totalorder 1, %s33
      %p505 = scmp.lt.s32.totalorder %s33, 3
      %p506 = pnand %p504, %p505
      %p507 = pneg %p506
      // Predicated region
      $region69: #{teacher_device.1} parent=5 // pred_check
        _
      $region70: #{teacher_device.1} parent=5 // pred_check_branch
        %509 = sbr.rel (%p506) target = $region72
      $region71: #{teacher_device.1} parent=5 // pred_region
        %s510 = ssub.s32 %s33, 1
        %p511 = scmp.lt.s32.totalorder %s38, 1
        %s512 = scalar_select %p511, %s38, 1
        %s513 = smul.addr %s512, 2
        %s514 = smul.addr %s513, 8
        %s515 = scalar_lea.vmem %s0, %s514
        %p516 = pneg %p59
        %p517 = pneg %p56
        %p518 = pneg %p80
        %p519 = pneg %p77
        %p520 = pneg %p101
        %p521 = pneg %p98
        %p522 = pneg %p122
        %p523 = pneg %p119
        %p524 = pneg %p143
        %p525 = pneg %p140
        %p526 = pneg %p164
        %p527 = pneg %p161
        %p528 = pneg %p185
        %p529 = pneg %p182
        %p530 = pneg %p206
        %p531 = pneg %p203
        %p532 = pneg %p227
        %p533 = pneg %p224
        %p534 = pneg %p248
        %p535 = pneg %p245
        %p536 = pneg %p269
        %p537 = pneg %p266
        %p538 = pneg %p290
        %p539 = pneg %p287
        %p540 = pneg %p311
        %p541 = pneg %p308
        %p542 = pneg %p337
        %p543 = pneg %p334
        %s544 = sand.u32 %s324, 1
        %s545 = scalar_lea.sflag [#allocation3], %s544
        %s546 = sand.u32 %s324, 1
        %s547 = smul.addr %s546, 8
        %s548 = scalar_lea.vmem [#allocation2], %s547
        %p549 = pneg %p363
        %p550 = pneg %p360
        %s551 = sand.u32 %s38, 1
        %s552 = scalar_lea.sflag [#allocation5], %s551
        %s553 = sand.u32 %s350, 1
        %s554 = smul.addr %s553, 16
        %s555 = scalar_lea.vmem [#allocation4], %s554
        %p556 = pneg %p389
        %p557 = pneg %p386
        %s558 = sand.u32 %s38, 1
        %s559 = scalar_lea.sflag [#allocation5], %s558
        %s560 = sand.u32 %s376, 1
        %s561 = smul.addr %s560, 16
        %s562 = scalar_lea.vmem [#allocation6], %s561
        %p563 = pneg %p415
        %p564 = pneg %p412
        %s565 = sand.u32 %s38, 1
        %s566 = scalar_lea.sflag [#allocation8], %s565
        %s567 = sand.u32 %s402, 1
        %s568 = smul.addr %s567, 16
        %s569 = scalar_lea.vmem [#allocation7], %s568
        %p570 = pneg %p441
        %p571 = pneg %p438
        %s572 = sand.u32 %s38, 1
        %s573 = scalar_lea.sflag [#allocation8], %s572
        %s574 = sand.u32 %s428, 1
        %s575 = smul.addr %s574, 2
        %s576 = scalar_lea.vmem [#allocation9], %s575
        %p577 = scmp.lt.s32.totalorder %s38, 1
        %s578 = scalar_select %p577, %s38, 1
        %s579 = smul.addr %s578, 2
        %s580 = smul.addr %s579, 8
        %s581 = scalar_lea.vmem %s0, %s580
        %v582 = vld [vmem:[%s581] sm:$0xff]
        %v583 = vld [vmem:[%s581 + $0x8] sm:$0xff]
        %v584 = vld [vmem:[%s1] sm:$0xff]
        %v585 = vld [vmem:[%s1 + $0x8] sm:$0xff]
        %v586 = vld [vmem:[%s1 + $0x10] sm:$0xff]
        %v587 = vld [vmem:[%s1 + $0x18] sm:$0xff]
        %v588 = vld [vmem:[%s1 + $0x20] sm:$0xff]
        %v589 = vld [vmem:[%s1 + $0x28] sm:$0xff]
        %v590 = vld [vmem:[%s1 + $0x30] sm:$0xff]
        %v591 = vld [vmem:[%s1 + $0x38] sm:$0xff]
        %v592 = vld [vmem:[%s1 + $0x40] sm:$0xff]
        %v593 = vld [vmem:[%s1 + $0x48] sm:$0xff]
        %v594 = vld [vmem:[%s1 + $0x50] sm:$0xff]
        %v595 = vld [vmem:[%s1 + $0x58] sm:$0xff]
        %v596 = vld [vmem:[%s1 + $0x60] sm:$0xff]
        %v597 = vld [vmem:[%s1 + $0x68] sm:$0xff]
        %v598 = vld [vmem:[%s1 + $0x70] sm:$0xff]
        %v599 = vld [vmem:[%s1 + $0x78] sm:$0xff]
        %v600 = vld [vmem:[%s2] sm:$0x1]
        %v602 = vperm.slane %v600, 0
        %604 = vmatpush.msra.mxu0 %v599
        %605 = vmatpush.msra.mxu0 %v598
        %606 = vmatpush.msra.mxu0 %v597
        %607 = vmatpush.msra.mxu0 %v596
        %608 = vmatpush.msra.mxu0 %v595
        %609 = vmatpush.msra.mxu0 %v594
        %610 = vmatpush.msra.mxu0 %v593
        %611 = vmatpush.msra.mxu0 %v592
        %612 = vmatpush.msra.mxu0 %v591
        %613 = vmatpush.msra.mxu0 %v590
        %614 = vmatpush.msra.mxu0 %v589
        %615 = vmatpush.msra.mxu0 %v588
        %616 = vmatpush.msra.mxu0 %v587
        %617 = vmatpush.msra.mxu0 %v586
        %618 = vmatpush.msra.mxu0 %v585
        %619 = vmatpush.msra.mxu0 %v584
        %620 = vmatmul.f32.gmra.mxu0 %v582
        %v621 = vpop.f32.mrf.mxu0
        %v622 = vadd.f32 %v602, %v621
        %623 = vmatmul.f32.gmra.mxu0 %v583
        %v624 = vpop.f32.mrf.mxu0
        %v625 = vadd.f32 %v602, %v624
        %626 = vdwg.mxu0
        %v627 = vmax.f32 %v622, 0.0
        %v628 = vmax.f32 %v625, 0.0
        %v629 = vld [vmem:[%s7] sm:$0xff]
        %v630 = vld [vmem:[%s7 + $0x8] sm:$0xff]
        %v631 = vld [vmem:[%s7 + $0x10] sm:$0xff]
        %v632 = vld [vmem:[%s7 + $0x18] sm:$0xff]
        %v633 = vld [vmem:[%s8] sm:$0x1]
        %v635 = vperm.slane %v633, 0
        %vm637 = vcmask 261120
        %v639 = vsel %vm637, %v627, 0
        %v642 = vsel %vm637, %v628, 0
        %644 = vmatpush.msra.mxu0 0.0
        %645 = vmatpush.msra.mxu0 0.0
        %646 = vmatpush.msra.mxu0 0.0
        %647 = vmatpush.msra.mxu0 0.0
        %648 = vmatpush.msra.mxu0 0.0
        %649 = vmatpush.msra.mxu0 0.0
        %650 = vmatpush.msra.mxu0 0.0
        %651 = vmatpush.msra.mxu0 0.0
        %652 = vmatpush.msra.mxu0 0.0
        %653 = vmatpush.msra.mxu0 0.0
        %654 = vmatpush.msra.mxu0 0.0
        %655 = vmatpush.msra.mxu0 0.0
        %656 = vmatpush.msra.mxu0 %v632
        %657 = vmatpush.msra.mxu0 %v631
        %658 = vmatpush.msra.mxu0 %v630
        %659 = vmatpush.msra.mxu0 %v629
        %660 = vmatmul.f32.gmra.mxu0 %v639
        %v661 = vpop.f32.mrf.mxu0
        %v662 = vadd.f32 %v635, %v661
        %663 = vmatmul.f32.gmra.mxu0 %v642
        %v664 = vpop.f32.mrf.mxu0
        %v665 = vadd.f32 %v635, %v664
        %666 = vdwg.mxu0
        %v667 = vmax.f32 %v662, 0.0
        %v668 = vmax.f32 %v665, 0.0
        %v669 = vld [vmem:[%s5] sm:$0xff]
        %v670 = vld [vmem:[%s5 + $0x8] sm:$0xff]
        %v671 = vld [vmem:[%s5 + $0x10] sm:$0xff]
        %v672 = vld [vmem:[%s5 + $0x18] sm:$0xff]
        %673 = vmatpush.msra.mxu0 0.0
        %674 = vmatpush.msra.mxu0 0.0
        %675 = vmatpush.msra.mxu0 0.0
        %676 = vmatpush.msra.mxu0 0.0
        %677 = vmatpush.msra.mxu0 0.0
        %678 = vmatpush.msra.mxu0 0.0
        %679 = vmatpush.msra.mxu0 0.0
        %680 = vmatpush.msra.mxu0 0.0
        %681 = vmatpush.msra.mxu0 0.0
        %682 = vmatpush.msra.mxu0 0.0
        %683 = vmatpush.msra.mxu0 0.0
        %684 = vmatpush.msra.mxu0 0.0
        %685 = vmatpush.msra.mxu0 %v672
        %686 = vmatpush.msra.mxu0 %v671
        %687 = vmatpush.msra.mxu0 %v670
        %688 = vmatpush.msra.mxu0 %v669
        %689 = vmatmul.f32.gmra.mxu0 %v639
        %v690 = vpop.f32.mrf.mxu0
        %v691 = vadd.f32 0.0, %v690
        %692 = vmatmul.f32.gmra.mxu0 %v642
        %v693 = vpop.f32.mrf.mxu0
        %v694 = vadd.f32 0.0, %v693
        %695 = vdwg.mxu0
        %v696 = vld [vmem:[%s6] sm:$0xff]
        %v697 = vld [vmem:[%s6 + $0x8] sm:$0xff]
        %v698 = vld [vmem:[%s6 + $0x10] sm:$0xff]
        %v699 = vld [vmem:[%s6 + $0x18] sm:$0xff]
        %700 = vmatpush.msra.mxu0 0.0
        %701 = vmatpush.msra.mxu0 0.0
        %702 = vmatpush.msra.mxu0 0.0
        %703 = vmatpush.msra.mxu0 0.0
        %704 = vmatpush.msra.mxu0 0.0
        %705 = vmatpush.msra.mxu0 0.0
        %706 = vmatpush.msra.mxu0 0.0
        %707 = vmatpush.msra.mxu0 0.0
        %708 = vmatpush.msra.mxu0 0.0
        %709 = vmatpush.msra.mxu0 0.0
        %710 = vmatpush.msra.mxu0 0.0
        %711 = vmatpush.msra.mxu0 0.0
        %712 = vmatpush.msra.mxu0 %v699
        %713 = vmatpush.msra.mxu0 %v698
        %714 = vmatpush.msra.mxu0 %v697
        %715 = vmatpush.msra.mxu0 %v696
        %716 = vmatmul.f32.gmra.mxu0 %v639
        %v717 = vpop.f32.mrf.mxu0
        %v718 = vadd.f32 0.0, %v717
        %719 = vmatmul.f32.gmra.mxu0 %v642
        %v720 = vpop.f32.mrf.mxu0
        %v721 = vadd.f32 0.0, %v720
        %722 = vdwg.mxu0
        %v723 = vld [vmem:[%s3] sm:$0xff]
        %v724 = vld [vmem:[%s4] sm:$0xff]
        %v725 = vld [vmem:[%s4 + $0x8] sm:$0xff]
        %v726 = vld [vmem:[%s4 + $0x10] sm:$0xff]
        %v727 = vld [vmem:[%s4 + $0x18] sm:$0xff]
        %v729 = vsel %vm637, %v723, 0
        %731 = vmatpush.msra.mxu0 0.0
        %732 = vmatpush.msra.mxu0 0.0
        %733 = vmatpush.msra.mxu0 0.0
        %734 = vmatpush.msra.mxu0 0.0
        %735 = vmatpush.msra.mxu0 0.0
        %736 = vmatpush.msra.mxu0 0.0
        %737 = vmatpush.msra.mxu0 0.0
        %738 = vmatpush.msra.mxu0 0.0
        %739 = vmatpush.msra.mxu0 0.0
        %740 = vmatpush.msra.mxu0 0.0
        %741 = vmatpush.msra.mxu0 0.0
        %742 = vmatpush.msra.mxu0 0.0
        %743 = vmatpush.msra.mxu0 %v727
        %744 = vmatpush.msra.mxu0 %v726
        %745 = vmatpush.msra.mxu0 %v725
        %746 = vmatpush.msra.mxu0 %v724
        %747 = vmatmul.f32.gmra.mxu0 %v729
        %v748 = vpop.f32.mrf.mxu0
        %v749 = vadd.f32 0.0, %v748
        %750 = vdwg.mxu0
        %v752 = vsel %vm637, %v749, 0
        %v755 = vsel %vm637, %v691, 0
        %v758 = vsel %vm637, %v694, 0
        %760 = vmatpush.xpose.msra.mxu0 0.0
        %761 = vmatpush.xpose.msra.mxu0 0.0
        %762 = vmatpush.xpose.msra.mxu0 0.0
        %763 = vmatpush.xpose.msra.mxu0 0.0
        %764 = vmatpush.xpose.msra.mxu0 0.0
        %765 = vmatpush.xpose.msra.mxu0 0.0
        %766 = vmatpush.xpose.msra.mxu0 0.0
        %767 = vmatpush.xpose.msra.mxu0 0.0
        %768 = vmatpush.xpose.msra.mxu0 0.0
        %769 = vmatpush.xpose.msra.mxu0 0.0
        %770 = vmatpush.xpose.msra.mxu0 0.0
        %771 = vmatpush.xpose.msra.mxu0 0.0
        %772 = vmatpush.xpose.msra.mxu0 0.0
        %773 = vmatpush.xpose.msra.mxu0 0.0
        %774 = vmatpush.xpose.msra.mxu0 %v758
        %775 = vmatpush.xpose.msra.mxu0 %v755
        %776 = vmatmul.f32.gmra.mxu0 %v752
        %v777 = vpop.f32.mrf.mxu0
        %v778 = vadd.f32 0.0, %v777
        %779 = vdwg.mxu0
        %v780 = vmul.f32 %v778, 0.17677669
        %vm781 = vcmask 130048
        %v782 = vsel %vm781, %v780, -inf
        %783 = vmax.xlane.f32.xlu0 %v782
        %v784 = vpop.xlane.xlu0 %783
        %v785 = vsub.f32 %v780, %v784
        %v786 = vmul.f32 %v785, 1.442695
        %v787 = vpow.pop %v786
        %v788 = vsel %vm781, %v787, 0.0
        %789 = vadd.xlane.f32.xlu0 %v788
        %v790 = vpop.xlane.xlu0 %789
        %v791 = vrcp.pop %v790
        %v792 = vmul.f32 %v787, %v791
        %v794 = vsel %vm781, %v792, 0
        %796 = vmatpush.msra.mxu0 0.0
        %797 = vmatpush.msra.mxu0 0.0
        %798 = vmatpush.msra.mxu0 0.0
        %799 = vmatpush.msra.mxu0 0.0
        %800 = vmatpush.msra.mxu0 0.0
        %801 = vmatpush.msra.mxu0 0.0
        %802 = vmatpush.msra.mxu0 0.0
        %803 = vmatpush.msra.mxu0 0.0
        %804 = vmatpush.msra.mxu0 0.0
        %805 = vmatpush.msra.mxu0 0.0
        %806 = vmatpush.msra.mxu0 0.0
        %807 = vmatpush.msra.mxu0 0.0
        %808 = vmatpush.msra.mxu0 0.0
        %809 = vmatpush.msra.mxu0 0.0
        %810 = vmatpush.msra.mxu0 %v721
        %811 = vmatpush.msra.mxu0 %v718
        %812 = vmatmul.f32.gmra.mxu0 %v794
        %v813 = vpop.f32.mrf.mxu0
        %v814 = vadd.f32 0.0, %v813
        %815 = vdwg.mxu0
        %v816 = vadd.f32 %v723, %v814
        %v817 = vld [vmem:[%s10] sm:$0xff]
        %v818 = vld [vmem:[%s10 + $0x8] sm:$0xff]
        %v819 = vld [vmem:[%s10 + $0x10] sm:$0xff]
        %v820 = vld [vmem:[%s10 + $0x18] sm:$0xff]
        %v821 = vld [vmem:[%s11] sm:$0x1]
        %v823 = vperm.slane %v821, 0
        %v826 = vsel %vm637, %v816, 0
        %828 = vmatpush.msra.mxu0 0.0
        %829 = vmatpush.msra.mxu0 0.0
        %830 = vmatpush.msra.mxu0 0.0
        %831 = vmatpush.msra.mxu0 0.0
        %832 = vmatpush.msra.mxu0 0.0
        %833 = vmatpush.msra.mxu0 0.0
        %834 = vmatpush.msra.mxu0 0.0
        %835 = vmatpush.msra.mxu0 0.0
        %836 = vmatpush.msra.mxu0 0.0
        %837 = vmatpush.msra.mxu0 0.0
        %838 = vmatpush.msra.mxu0 0.0
        %839 = vmatpush.msra.mxu0 0.0
        %840 = vmatpush.msra.mxu0 %v820
        %841 = vmatpush.msra.mxu0 %v819
        %842 = vmatpush.msra.mxu0 %v818
        %843 = vmatpush.msra.mxu0 %v817
        %844 = vmatmul.f32.gmra.mxu0 %v826
        %v845 = vpop.f32.mrf.mxu0
        %v846 = vadd.f32 %v823, %v845
        %847 = vdwg.mxu0
        %vm848 = vcmask 48128
        %v849 = vsel %vm848, %v846, -inf
        %850 = vmax.xlane.f32.xlu0 %v849
        %v851 = vpop.xlane.xlu0 %850
        %v852 = vsub.f32 %v846, %v851
        %v853 = vmul.f32 %v852, 1.442695
        %v854 = vpow.pop %v853
        %v855 = vsel %vm848, %v854, 0.0
        %856 = vadd.xlane.f32.xlu0 %v855
        %v857 = vpop.xlane.xlu0 %856
        %v858 = vrcp.pop %v857
        %v859 = vmul.f32 %v854, %v858
        %v860 = vsel %vm848, %v859, -inf
        %861 = vmax.xlane.f32.xlu0 %v860
        %v862 = vpop.xlane.xlu0 %861
        %v863 = vlaneseq
        %v864 = vand.u32 %v863, 127
        %vm865 = vcmp.eq.f32.partialorder %v859, %v862
        %v866 = vsel %vm865, %v864, 6
        %v867 = vsel %vm848, %v866, 2147483647
        %v868 = vand.u32 %v867, 65535
        %v869 = vshra.s32 %v867, 16
        %v870 = vcvt.s32.f32 %v868
        %v871 = vcvt.s32.f32 %v869
        %872 = vmin.xlane.f32.xlu0 %v871
        %v873 = vpop.xlane.xlu0 %872
        %vm874 = vcmp.eq.f32.partialorder %v871, %v873
        %v875 = vsel %vm874, %v870, inf
        %876 = vmin.xlane.f32.xlu0 %v875
        %v877 = vpop.xlane.xlu0 %876
        %v878 = vcvt.f32.s32 %v877
        %v879 = vcvt.f32.s32 %v873
        %v880 = vshll.u32 %v879, 16
        %v881 = vadd.s32 %v880, %v878
        %vm882 = vcmp.ne.s32.totalorder %v881, 5
        %vm883 = vcmp.gt.f32.partialorder %v862, 0.0
        %vm884 = vmand %vm882, %vm883
        %v885 = vld [vmem:[%s9] sm:$0xff]
        %v886 = vld [vmem:[%s9 + $0x8] sm:$0xff]
        %v887 = vld [vmem:[%s9 + $0x10] sm:$0xff]
        %v888 = vld [vmem:[%s9 + $0x18] sm:$0xff]
        %889 = vmatpush.msra.mxu0 0.0
        %890 = vmatpush.msra.mxu0 0.0
        %891 = vmatpush.msra.mxu0 0.0
        %892 = vmatpush.msra.mxu0 0.0
        %893 = vmatpush.msra.mxu0 0.0
        %894 = vmatpush.msra.mxu0 0.0
        %895 = vmatpush.msra.mxu0 0.0
        %896 = vmatpush.msra.mxu0 0.0
        %897 = vmatpush.msra.mxu0 0.0
        %898 = vmatpush.msra.mxu0 0.0
        %899 = vmatpush.msra.mxu0 0.0
        %900 = vmatpush.msra.mxu0 0.0
        %901 = vmatpush.msra.mxu0 %v888
        %902 = vmatpush.msra.mxu0 %v887
        %903 = vmatpush.msra.mxu0 %v886
        %904 = vmatpush.msra.mxu0 %v885
        %905 = vmatmul.f32.gmra.mxu0 %v826
        %v906 = vpop.f32.mrf.mxu0
        %v907 = vadd.f32 0.0, %v906
        %908 = vdwg.mxu0
        %v910 = vsel %vm637, %v907, 0
        %v913 = vsel %vm637, %v667, 0
        %v916 = vsel %vm637, %v668, 0
        %918 = vmatpush.xpose.msra.mxu0 0.0
        %919 = vmatpush.xpose.msra.mxu0 0.0
        %920 = vmatpush.xpose.msra.mxu0 0.0
        %921 = vmatpush.xpose.msra.mxu0 0.0
        %922 = vmatpush.xpose.msra.mxu0 0.0
        %923 = vmatpush.xpose.msra.mxu0 0.0
        %924 = vmatpush.xpose.msra.mxu0 0.0
        %925 = vmatpush.xpose.msra.mxu0 0.0
        %926 = vmatpush.xpose.msra.mxu0 0.0
        %927 = vmatpush.xpose.msra.mxu0 0.0
        %928 = vmatpush.xpose.msra.mxu0 0.0
        %929 = vmatpush.xpose.msra.mxu0 0.0
        %930 = vmatpush.xpose.msra.mxu0 0.0
        %931 = vmatpush.xpose.msra.mxu0 0.0
        %932 = vmatpush.xpose.msra.mxu0 %v916
        %933 = vmatpush.xpose.msra.mxu0 %v913
        %934 = vmatmul.f32.gmra.mxu0 %v910
        %v935 = vpop.f32.mrf.mxu0
        %v936 = vadd.f32 0.0, %v935
        %937 = vdwg.mxu0
        %v938 = vld [vmem:[%s12] sm:$0xff]
        %v939 = vld [vmem:[%s12 + $0x8] sm:$0xff]
        %v940 = vld [vmem:[%s12 + $0x10] sm:$0xff]
        %v941 = vld [vmem:[%s12 + $0x18] sm:$0xff]
        %v943 = vsel %vm781, %v936, 0
        %945 = vmatpush.msra.mxu0 0.0
        %946 = vmatpush.msra.mxu0 0.0
        %947 = vmatpush.msra.mxu0 0.0
        %948 = vmatpush.msra.mxu0 0.0
        %949 = vmatpush.msra.mxu0 0.0
        %950 = vmatpush.msra.mxu0 0.0
        %951 = vmatpush.msra.mxu0 0.0
        %952 = vmatpush.msra.mxu0 0.0
        %953 = vmatpush.msra.mxu0 0.0
        %954 = vmatpush.msra.mxu0 0.0
        %955 = vmatpush.msra.mxu0 0.0
        %956 = vmatpush.msra.mxu0 0.0
        %957 = vmatpush.msra.mxu0 0.0
        %958 = vmatpush.msra.mxu0 0.0
        %959 = vmatpush.msra.mxu0 %v940
        %960 = vmatpush.msra.mxu0 %v938
        %961 = vmatmul.f32.gmra.mxu0 %v943
        %v962 = vpop.f32.mrf.mxu0
        %v963 = vadd.f32 0.0, %v962
        %964 = vdwg.mxu0
        %965 = vmatpush.msra.mxu0 0.0
        %966 = vmatpush.msra.mxu0 0.0
        %967 = vmatpush.msra.mxu0 0.0
        %968 = vmatpush.msra.mxu0 0.0
        %969 = vmatpush.msra.mxu0 0.0
        %970 = vmatpush.msra.mxu0 0.0
        %971 = vmatpush.msra.mxu0 0.0
        %972 = vmatpush.msra.mxu0 0.0
        %973 = vmatpush.msra.mxu0 0.0
        %974 = vmatpush.msra.mxu0 0.0
        %975 = vmatpush.msra.mxu0 0.0
        %976 = vmatpush.msra.mxu0 0.0
        %977 = vmatpush.msra.mxu0 0.0
        %978 = vmatpush.msra.mxu0 0.0
        %979 = vmatpush.msra.mxu0 %v941
        %980 = vmatpush.msra.mxu0 %v939
        %981 = vmatmul.f32.gmra.mxu0 %v943
        %v982 = vpop.f32.mrf.mxu0
        %v983 = vadd.f32 0.0, %v982
        %984 = vdwg.mxu0
        %v985 = vsub.f32 0.0, %v963
        %v986 = vsub.f32 0.0, %v983
        %v987 = vmul.f32 %v985, 1.442695
        %v988 = vpow.pop %v987
        %v989 = vmul.f32 %v986, 1.442695
        %v990 = vpow.pop %v989
        %v991 = vadd.f32 %v988, 1.0
        %v992 = vadd.f32 %v990, 1.0
        %v993 = vrcp.pop %v991
        %v994 = vrcp.pop %v992
        %v995 = vmul.f32 %v862, %v993
        %v996 = vmul.f32 %v862, %v994
        %v997 = vsel %vm884, 1, 0
        %vm998 = vcmp.eq.s32.totalorder %v997, 1
        %v999 = vsel %vm998, %v995, -inf
        %v1000 = vsel %vm998, %v996, -inf
        %v1001 = vrot.slane %v999, 4
        %v1002 = vmax.f32 %v999, %v1001
        %v1003 = vrot.slane %v1002, 2
        %v1004 = vmax.f32 %v1002, %v1003
        %v1005 = vrot.slane %v1004, 1
        %v1006 = vmax.f32 %v1004, %v1005
        %v1007 = vrot.slane %v1000, 4
        %v1008 = vmax.f32 %v1000, %v1007
        %v1009 = vrot.slane %v1008, 2
        %v1010 = vmax.f32 %v1008, %v1009
        %v1011 = vrot.slane %v1010, 1
        %v1012 = vmax.f32 %v1010, %v1011
        %v1013 = vlaneseq
        %v1014 = vshrl.u32 %v1013, 7
        %vm1015 = vcmp.eq.f32.partialorder %v999, %v1006
        %vm1016 = vcmp.eq.f32.partialorder %v1000, %v1012
        %v1017 = vsel %vm1015, %v1014, 8
        %v1018 = vsel %vm1016, %v1014, 8
        %v1019 = vrot.slane %v1017, 4
        %vm1020 = vcmp.lt.s32.totalorder %v1017, %v1019
        %v1021 = vsel %vm1020, %v1017, %v1019
        %v1022 = vrot.slane %v1021, 2
        %vm1023 = vcmp.lt.s32.totalorder %v1021, %v1022
        %v1024 = vsel %vm1023, %v1021, %v1022
        %v1025 = vrot.slane %v1024, 1
        %vm1026 = vcmp.lt.s32.totalorder %v1024, %v1025
        %v1027 = vsel %vm1026, %v1024, %v1025
        %v1028 = vrot.slane %v1018, 4
        %vm1029 = vcmp.lt.s32.totalorder %v1018, %v1028
        %v1030 = vsel %vm1029, %v1018, %v1028
        %v1031 = vrot.slane %v1030, 2
        %vm1032 = vcmp.lt.s32.totalorder %v1030, %v1031
        %v1033 = vsel %vm1032, %v1030, %v1031
        %v1034 = vrot.slane %v1033, 1
        %vm1035 = vcmp.lt.s32.totalorder %v1033, %v1034
        %v1036 = vsel %vm1035, %v1033, %v1034
        %vm1037 = vcmp.eq.s32.totalorder %v864, 0
        %v1038 = vsel %vm1037, %v862, 0.0
        %vm1039 = vcmp.eq.s32.totalorder %v864, 1
        %v1040 = vcvt.s32.f32 %v881
        %v1041 = vsel %vm1039, %v1040, %v1038
        %vm1042 = vcmp.eq.s32.totalorder %v864, 2
        %v1043 = vsel %vm884, 1.0, 0.0
        %v1044 = vsel %vm1042, %v1043, %v1041
        %1045 = vst [vmem:[%s548] sm:$0xff] %v1044
        %1046 = vst [vmem:[%s555] sm:$0xff] %v963
        %1047 = vst [vmem:[%s555 + $0x8] sm:$0xff] %v983
        %1048 = vst [vmem:[%s562] sm:$0xff] %v993
        %1049 = vst [vmem:[%s562 + $0x8] sm:$0xff] %v994
        %1050 = vst [vmem:[%s569] sm:$0xff] %v995
        %1051 = vst [vmem:[%s569 + $0x8] sm:$0xff] %v996
        %v1052 = vrot.slane %v1036, 7
        %vm1053 = vcmask 1040384
        %v1054 = vsel %vm1053, %v1027, %v1052
        %v1055 = vlaneseq
        %vm1056 = vcmp.ge.s32.totalorder %v1055, 0
        %vm1057 = vcmp.lt.s32.totalorder %v1055, 256
        %vm1058 = vmand %vm1056, %vm1057
        %1059 = vst.msk [vmem:[%s576] sm:$0x3] %vm1058, %v1054
        %s1060 = sand.u32 %s324, 1
        %s1061 = scalar_lea.sflag [#allocation3], %s1060
        %s1062 = sand.u32 %s324, 1
        %s1063 = smul.addr %s1062, 8
        %s1064 = scalar_lea.vmem [#allocation2], %s1063
        %s1065 = sand.u32 %s38, 1
        %s1066 = scalar_lea.sflag [#allocation5], %s1065
        %s1067 = sand.u32 %s350, 1
        %s1068 = smul.addr %s1067, 16
        %s1069 = scalar_lea.vmem [#allocation4], %s1068
        %s1070 = sand.u32 %s38, 1
        %s1071 = scalar_lea.sflag [#allocation5], %s1070
        %s1072 = sand.u32 %s376, 1
        %s1073 = smul.addr %s1072, 16
        %s1074 = scalar_lea.vmem [#allocation6], %s1073
        %s1075 = sand.u32 %s38, 1
        %s1076 = scalar_lea.sflag [#allocation8], %s1075
        %s1077 = sand.u32 %s402, 1
        %s1078 = smul.addr %s1077, 16
        %s1079 = scalar_lea.vmem [#allocation7], %s1078
        %s1080 = sand.u32 %s38, 1
        %s1081 = scalar_lea.sflag [#allocation8], %s1080
        %s1082 = sand.u32 %s428, 1
        %s1083 = smul.addr %s1082, 2
        %s1084 = scalar_lea.vmem [#allocation9], %s1083
        // Predicated region
        $region73: #{teacher_device.1} parent=71 // pred_check
          %p1085 = pneg %p334
        $region74: #{teacher_device.1} parent=71 // pred_check_branch
          %1087 = sbr.rel (%p1085) target = $region76
        $region75: #{teacher_device.1} parent=71 // pred_region
          %1089 = vsyncadd %s1061, 0
          %s1090 = smul.addr %s38, 8
          %s1091 = scalar_lea.hbm %s13, %s1090
          %s1093 = sshll.u32 %s1064, 4
          %s1094 = int_to_ptr.vmem [resolvable:$true] %s1093
          %s1095 = sshll.u32 %s1091, 4
          %s1096 = int_to_ptr.hbm [resolvable:$true] %s1095
          %1098 = dma.vmem_to_hbm [thread:$0]  %s1094, 128, %s1096, %s1061
        $region76: #{teacher_device.1} parent=71 // pred_fallthru
          _
        // Predicated region
        $region77: #{teacher_device.1} parent=71 // pred_check
          %p1099 = pneg %p360
        $region78: #{teacher_device.1} parent=71 // pred_check_branch
          %1101 = sbr.rel (%p1099) target = $region80
        $region79: #{teacher_device.1} parent=71 // pred_region
          %1103 = vsyncadd %s1066, 0
          %s1104 = smul.addr %s38, 2
          %s1105 = smul.addr %s1104, 8
          %s1106 = scalar_lea.hbm %s14, %s1105
          %s1108 = sshll.u32 %s1069, 4
          %s1109 = int_to_ptr.vmem [resolvable:$true] %s1108
          %s1110 = sshll.u32 %s1106, 4
          %s1111 = int_to_ptr.hbm [resolvable:$true] %s1110
          %1113 = dma.vmem_to_hbm [thread:$0]  %s1109, 256, %s1111, %s1066
        $region80: #{teacher_device.1} parent=71 // pred_fallthru
          _
        // Predicated region
        $region81: #{teacher_device.1} parent=71 // pred_check
          %p1114 = pneg %p386
        $region82: #{teacher_device.1} parent=71 // pred_check_branch
          %1116 = sbr.rel (%p1114) target = $region84
        $region83: #{teacher_device.1} parent=71 // pred_region
          %1118 = vsyncadd %s1071, 0
          %s1119 = smul.addr %s38, 2
          %s1120 = smul.addr %s1119, 8
          %s1121 = scalar_lea.hbm %s15, %s1120
          %s1123 = sshll.u32 %s1074, 4
          %s1124 = int_to_ptr.vmem [resolvable:$true] %s1123
          %s1125 = sshll.u32 %s1121, 4
          %s1126 = int_to_ptr.hbm [resolvable:$true] %s1125
          %1128 = dma.vmem_to_hbm [thread:$0]  %s1124, 256, %s1126, %s1071
        $region84: #{teacher_device.1} parent=71 // pred_fallthru
          _
        // Predicated region
        $region85: #{teacher_device.1} parent=71 // pred_check
          %p1129 = pneg %p412
        $region86: #{teacher_device.1} parent=71 // pred_check_branch
          %1131 = sbr.rel (%p1129) target = $region88
        $region87: #{teacher_device.1} parent=71 // pred_region
          %1133 = vsyncadd %s1076, 0
          %s1134 = smul.addr %s38, 2
          %s1135 = smul.addr %s1134, 8
          %s1136 = scalar_lea.hbm %s16, %s1135
          %s1138 = sshll.u32 %s1079, 4
          %s1139 = int_to_ptr.vmem [resolvable:$true] %s1138
          %s1140 = sshll.u32 %s1136, 4
          %s1141 = int_to_ptr.hbm [resolvable:$true] %s1140
          %1143 = dma.vmem_to_hbm [thread:$0]  %s1139, 256, %s1141, %s1076
        $region88: #{teacher_device.1} parent=71 // pred_fallthru
          _
        // Predicated region
        $region89: #{teacher_device.1} parent=71 // pred_check
          %p1144 = pneg %p438
        $region90: #{teacher_device.1} parent=71 // pred_check_branch
          %1146 = sbr.rel (%p1144) target = $region92
        $region91: #{teacher_device.1} parent=71 // pred_region
          %1148 = vsyncadd %s1081, 0
          %s1149 = smul.addr %s38, 2
          %s1150 = scalar_lea.hbm %s17, %s1149
          %s1152 = sshll.u32 %s1084, 4
          %s1153 = int_to_ptr.vmem [resolvable:$true] %s1152
          %s1154 = sshll.u32 %s1150, 4
          %s1155 = int_to_ptr.hbm [resolvable:$true] %s1154
          %1157 = dma.vmem_to_hbm [thread:$0]  %s1153, 32, %s1155, %s1081
        $region92: #{teacher_device.1} parent=71 // pred_fallthru
          _
      $region72: #{teacher_device.1} parent=5 // pred_fallthru
        _
      %p1158 = scmp.le.s32.totalorder 2, %s33
      // Predicated region
      $region93: #{teacher_device.1} parent=5 // pred_check
        %p1159 = pneg %p1158
      $region94: #{teacher_device.1} parent=5 // pred_check_branch
        %1161 = sbr.rel (%p1159) target = $region96
      $region95: #{teacher_device.1} parent=5 // pred_region
        %s1162 = ssub.s32 %s33, 2
        // Predicated region
        $region97: #{teacher_device.1} parent=95 // pred_check
          %p1163 = pneg %p340
        $region98: #{teacher_device.1} parent=95 // pred_check_branch
          %1165 = sbr.rel (%p1163) target = $region100
        $region99: #{teacher_device.1} parent=95 // pred_region
          %s1166 = sand.u32 %s325, 1
          %s1167 = scalar_lea.sflag [#allocation3], %s1166
          %s1168 = sand.u32 %s325, 1
          %s1169 = smul.addr %s1168, 8
          %s1170 = scalar_lea.vmem [#allocation2], %s1169
          %1172 = dma.done %s1167, 128
        $region100: #{teacher_device.1} parent=95 // pred_fallthru
          _
        // Predicated region
        $region101: #{teacher_device.1} parent=95 // pred_check
          %p1173 = pneg %p366
        $region102: #{teacher_device.1} parent=95 // pred_check_branch
          %1175 = sbr.rel (%p1173) target = $region104
        $region103: #{teacher_device.1} parent=95 // pred_region
          %s1176 = sand.u32 %s39, 1
          %s1177 = scalar_lea.sflag [#allocation5], %s1176
          %s1178 = sand.u32 %s351, 1
          %s1179 = smul.addr %s1178, 16
          %s1180 = scalar_lea.vmem [#allocation4], %s1179
          %1182 = dma.done %s1177, 256
        $region104: #{teacher_device.1} parent=95 // pred_fallthru
          _
        // Predicated region
        $region105: #{teacher_device.1} parent=95 // pred_check
          %p1183 = pneg %p392
        $region106: #{teacher_device.1} parent=95 // pred_check_branch
          %1185 = sbr.rel (%p1183) target = $region108
        $region107: #{teacher_device.1} parent=95 // pred_region
          %s1186 = sand.u32 %s39, 1
          %s1187 = scalar_lea.sflag [#allocation5], %s1186
          %s1188 = sand.u32 %s377, 1
          %s1189 = smul.addr %s1188, 16
          %s1190 = scalar_lea.vmem [#allocation6], %s1189
          %1192 = dma.done %s1187, 256
        $region108: #{teacher_device.1} parent=95 // pred_fallthru
          _
        // Predicated region
        $region109: #{teacher_device.1} parent=95 // pred_check
          %p1193 = pneg %p418
        $region110: #{teacher_device.1} parent=95 // pred_check_branch
          %1195 = sbr.rel (%p1193) target = $region112
        $region111: #{teacher_device.1} parent=95 // pred_region
          %s1196 = sand.u32 %s39, 1
          %s1197 = scalar_lea.sflag [#allocation8], %s1196
          %s1198 = sand.u32 %s403, 1
          %s1199 = smul.addr %s1198, 16
          %s1200 = scalar_lea.vmem [#allocation7], %s1199
          %1202 = dma.done %s1197, 256
        $region112: #{teacher_device.1} parent=95 // pred_fallthru
          _
        // Predicated region
        $region113: #{teacher_device.1} parent=95 // pred_check
          %p1203 = pneg %p444
        $region114: #{teacher_device.1} parent=95 // pred_check_branch
          %1205 = sbr.rel (%p1203) target = $region116
        $region115: #{teacher_device.1} parent=95 // pred_region
          %s1206 = sand.u32 %s39, 1
          %s1207 = scalar_lea.sflag [#allocation8], %s1206
          %s1208 = sand.u32 %s429, 1
          %s1209 = smul.addr %s1208, 2
          %s1210 = scalar_lea.vmem [#allocation9], %s1209
          %1212 = dma.done %s1207, 32
        $region116: #{teacher_device.1} parent=95 // pred_fallthru
          _
      $region96: #{teacher_device.1} parent=5 // pred_fallthru
        _
    $region6: #{teacher_device.1} parent=1 // loop_footer
      %s37 = sadd.s32 1, %s33
    $region7: #{teacher_device.1} parent=1 // loop_footer_branch
      %32 = sbr.rel target = $region3
    $region8: #{teacher_device.1} parent=1 // loop_exit
      _
    %1213 = vsyncpa [#allocation3], 1
    %s1214 = scalar_lea.sflag [#allocation3], 1
    %1215 = vsyncpa %s1214, 1
    %1216 = vsyncpa [#allocation5], 1
    %s1217 = scalar_lea.sflag [#allocation5], 1
    %1218 = vsyncpa %s1217, 1
    %1219 = vsyncpa [#allocation8], 1
    %s1220 = scalar_lea.sflag [#allocation8], 1
    %1221 = vsyncpa %s1220, 1

</llo_original>
